<compile_context>
chip_gen: v7x
topology: tpu7x:2x2x1
jax: 0.10.0
libtpu: 0.0.40
codegen_flags: <defaults>
</compile_context>

<pallas_src>
import functools
import math

import jax
import jax.numpy as jnp
import numpy as np
from jax.experimental import pallas as pl
from jax.experimental.pallas import tpu as pltpu

_VMEM_LIMIT_BYTES = 32 * 1024 * 1024  # safe on v5e/v6e (128 MiB) and v7x (64 MiB)


def _round_up(x: int, m: int) -> int:
    return ((x + m - 1) // m) * m


def _pick_tiles(n: int):
    """Node padding + propagation tile sizes.

    Small graphs: 128 tiles (minimal padded work, still (8,128)/MXU legal).
    Medium: 256 -> at least 2 row tiles so both v7x TensorCores get work.
    Large: 512 / 1024 to amortize per-grid-step overhead and cut base re-reads.
    """
    if n <= 256:
        tm = tk = 128
    elif n <= 2048:
        tm = tk = 256
    elif n <= 8192:
        tm = tk = 512
    else:
        tm = tk = 1024
    n_pad = _round_up(n, max(tm, tk))
    return n_pad, tm, tk


def prepare_adjacency(adj_dense, *, n_pad: int, tm: int, tk: int):
    """One-off (host-side, OUTSIDE the jitted path) adjacency preprocessing.

    Pads, casts to bf16, and builds the block-CSR column-block lists that the
    propagation kernel uses to skip all-zero adjacency tiles.
    """
    adj_np = np.asarray(adj_dense, dtype=np.float32)
    n = adj_np.shape[0]
    adj_pad = np.zeros((n_pad, n_pad), dtype=np.float32)
    adj_pad[:n, :n] = adj_np

    row_tiles = n_pad // tm
    col_blocks = n_pad // tk
    nz = (adj_pad != 0.0).reshape(row_tiles, tm, col_blocks, tk).any(axis=(1, 3))
    counts = nz.sum(axis=1).astype(np.int32)              # (row_tiles,)
    max_blocks = max(int(counts.max()), 1)

    col_idx = np.zeros((row_tiles, max_blocks), dtype=np.int32)
    for i in range(row_tiles):
        cols = np.nonzero(nz[i])[0].astype(np.int32)
        if cols.size == 0:                                  # pure-padding row tile
            cols = np.array([0], dtype=np.int32)            # valid block; count==0 gates it
        col_idx[i, :cols.size] = cols
        col_idx[i, cols.size:] = cols[-1]                   # repeat -> no extra DMA

    adj_bf16 = jnp.asarray(adj_pad, dtype=jnp.bfloat16)     # dominant HBM stream in bf16
    return (adj_bf16,
            jnp.asarray(col_idx.reshape(-1)),               # flat int32 (SMEM friendly)
            jnp.asarray(counts),
            max_blocks)


def _make_transform_kernel(dropout_rate: float, training: bool, add_bias: bool):
    """features @ W (+ dropout) (+ bias when there is no propagation)."""
    use_dropout = training and 0.0 < dropout_rate < 1.0
    zero_out = training and dropout_rate >= 1.0

    def kernel(seed_ref, feat_ref, w_ref, *rest):
        if add_bias:
            b_ref, out_ref = rest
        else:
            (out_ref,) = rest

        base = jnp.dot(feat_ref[...], w_ref[...],
                       preferred_element_type=jnp.float32)

        if zero_out:
            base = jnp.zeros_like(base)
        elif use_dropout:
            # Inverted dropout with the on-chip PRNG (integer threshold compare,
            # per-row-tile seed offset).
            # TODO(synk): cannot bitwise-match torch.nn.functional.dropout RNG.
            pltpu.prng_seed(seed_ref[0] + pl.program_id(0))
            bits = pltpu.bitcast(pltpu.prng_random_bits(base.shape), jnp.uint32)
            thresh = jnp.uint32(min(int(round(dropout_rate * 2.0 ** 32)),
                                    2 ** 32 - 1))
            base = jnp.where(bits >= thresh,
                             base * (1.0 / (1.0 - dropout_rate)), 0.0)

        if add_bias:
            base = base + b_ref[...]
        out_ref[...] = base.astype(out_ref.dtype)           # bf16 unless last stage

    return kernel


def _make_propagate_kernel(add_bias: bool):
    """One adjacency hop over non-zero blocks only:
       out[i,:] = sum_{k in nz(i)} adj[i,k] @ base[k,:] (+ bias on the last hop)."""

    def kernel(cidx_ref, cnt_ref, adj_ref, base_ref, *rest):
        if add_bias:
            b_ref, out_ref, acc_ref = rest
        else:
            out_ref, acc_ref = rest

        i = pl.program_id(0)
        j = pl.program_id(1)

        @pl.when(j == 0)
        def _():
            acc_ref[...] = jnp.zeros_like(acc_ref)

        # Only real (non-padded) blocks contribute.
        @pl.when(j < cnt_ref[i])
        def _():
            acc_ref[...] += jnp.dot(adj_ref[...], base_ref[...],
                                    preferred_element_type=jnp.float32)

        @pl.when(j == pl.num_programs(1) - 1)
        def _():
            res = acc_ref[...]
            if add_bias:
                res = res + b_ref[...]
            out_ref[...] = res.astype(out_ref.dtype)

    return kernel


@functools.partial(
    jax.jit,
    static_argnames=("iterations", "dropout_rate", "training",
                     "tm", "tk", "max_blocks"))
def dense_ngcn_layer(adj_p, col_idx, counts, features, weight, bias, seed,
                     *, iterations, dropout_rate, training, tm, tk, max_blocks):
    n, in_ch = features.shape
    out_ch = weight.shape[1]
    n_pad = adj_p.shape[0]
    c_pad = max(_round_up(out_ch, 128), 128)               # lane-dense channel slab

    feat_p = jnp.pad(features.astype(jnp.float32), ((0, n_pad - n), (0, 0)))
    w_p = jnp.pad(weight.astype(jnp.float32), ((0, 0), (0, c_pad - out_ch)))
    b_p = jnp.pad(bias.astype(jnp.float32), ((0, 0), (0, c_pad - out_ch)))

    # Inter-hop base activations live in bf16 (halves the re-streamed base);
    # only the final result is f32.
    base_dtype = jnp.bfloat16 if iterations > 1 else jnp.float32

    # ---------------- 1) feature transform (+ dropout) --------------------
    tm_t = min(tm, 256)      # keep the (tm_t, in_ch) f32 block modest in VMEM
    add_bias_t = (iterations == 1)

    t_in_specs = [
        pl.BlockSpec((tm_t, in_ch), lambda i, seed: (i, 0)),
        pl.BlockSpec((in_ch, c_pad), lambda i, seed: (0, 0)),
    ]
    t_args = [feat_p, w_p]
    if add_bias_t:
        t_in_specs.append(pl.BlockSpec((1, c_pad), lambda i, seed: (0, 0)))
        t_args.append(b_p)

    base = pl.pallas_call(
        _make_transform_kernel(dropout_rate, training, add_bias=add_bias_t),
        out_shape=jax.ShapeDtypeStruct((n_pad, c_pad), base_dtype),
        grid_spec=pltpu.PrefetchScalarGridSpec(
            num_scalar_prefetch=1,                          # seed -> SMEM
            grid=(n_pad // tm_t,),
            in_specs=t_in_specs,
            out_specs=pl.BlockSpec((tm_t, c_pad), lambda i, seed: (i, 0)),
        ),
        compiler_params=pltpu.CompilerParams(
            dimension_semantics=("parallel",),
            vmem_limit_bytes=_VMEM_LIMIT_BYTES),
        cost_estimate=pl.CostEstimate(
            flops=2 * n_pad * in_ch * c_pad,
            transcendentals=0,
            bytes_accessed=(4 * n_pad * in_ch + 4 * in_ch * c_pad
                            + jnp.dtype(base_dtype).itemsize * n_pad * c_pad)),
    )(seed, *t_args)

    # ---------------- 2) block-sparse adjacency propagation ---------------
    row_tiles = n_pad // tm

    def adj_map(i, j, cidx, cnt):
        return (i, cidx[i * max_blocks + j])

    def base_map(i, j, cidx, cnt):
        return (cidx[i * max_blocks + j], 0)

    def out_map(i, j, cidx, cnt):
        return (i, 0)

    def bias_map(i, j, cidx, cnt):
        return (0, 0)

    for hop in range(iterations - 1):
        add_bias = (hop == iterations - 2)                  # fuse bias into last hop
        out_dtype = jnp.float32 if add_bias else jnp.bfloat16

        in_specs = [
            pl.BlockSpec((tm, tk), adj_map),                # adjacency bf16 tile
            pl.BlockSpec((tk, c_pad), base_map),            # base bf16 tile
        ]
        args = [adj_p, base]
        if add_bias:
            in_specs.append(pl.BlockSpec((1, c_pad), bias_map))
            args.append(b_p)

        base = pl.pallas_call(
            _make_propagate_kernel(add_bias),
            out_shape=jax.ShapeDtypeStruct((n_pad, c_pad), out_dtype),
            grid_spec=pltpu.PrefetchScalarGridSpec(
                num_scalar_prefetch=2,                      # col_idx, counts -> SMEM
                grid=(row_tiles, max_blocks),
                in_specs=in_specs,
                out_specs=pl.BlockSpec((tm, c_pad), out_map),
                scratch_shapes=[pltpu.VMEM((tm, c_pad), jnp.float32)],
            ),
            compiler_params=pltpu.CompilerParams(
                dimension_semantics=("parallel", "arbitrary"),
                vmem_limit_bytes=_VMEM_LIMIT_BYTES),
            cost_estimate=pl.CostEstimate(
                flops=2 * row_tiles * max_blocks * tm * tk * c_pad,
                transcendentals=0,
                bytes_accessed=(2 * row_tiles * max_blocks * tm * tk        # adj bf16
                                + 2 * row_tiles * max_blocks * tk * c_pad   # base re-reads
                                + jnp.dtype(out_dtype).itemsize * n_pad * c_pad)),
        )(col_idx, counts, *args)

    return base[:n, :out_ch]


def _xavier_uniform(key, shape):
    # torch.nn.init.xavier_uniform_ for a 2D tensor: bound = sqrt(6/(fan_in+fan_out)).
    fan_out, fan_in = shape[0], shape[1]
    bound = math.sqrt(6.0 / (fan_in + fan_out))
    return jax.random.uniform(key, shape, jnp.float32, -bound, bound)


def _build_normalized_adjacency(n_nodes):
    # Deterministic small sparse graph (ring + a few random chords),
    # symmetrically normalized: D^-1/2 (A + I) D^-1/2, densified (numpy).
    a = np.zeros((n_nodes, n_nodes), dtype=np.float32)
    for i in range(n_nodes):
        a[i, (i + 1) % n_nodes] = 1.0
        a[(i + 1) % n_nodes, i] = 1.0
    rng = np.random.default_rng(0)
    extra = rng.integers(0, n_nodes, size=(n_nodes, 2))
    for i, j in extra:
        if i != j:
            a[i, j] = 1.0
            a[j, i] = 1.0
    a = a + np.eye(n_nodes, dtype=np.float32)
    d_inv_sqrt = 1.0 / np.sqrt(a.sum(axis=1))
    return (a * d_inv_sqrt[:, None]) * d_inv_sqrt[None, :]


if __name__ == "__main__":
    # Small shapes consistent with the module.
    N_NODES = 64
    IN_CHANNELS = 32
    OUT_CHANNELS = 16
    ITERATIONS = 3
    DROPOUT_RATE = 0.5
    TRAINING = False   # eval-mode forward (dropout is identity)

    key = jax.random.PRNGKey(0)
    k_feat, k_w, k_b = jax.random.split(key, 3)

    features = jax.random.normal(k_feat, (N_NODES, IN_CHANNELS), jnp.float32)
    weight = _xavier_uniform(k_w, (IN_CHANNELS, OUT_CHANNELS))
    bias = _xavier_uniform(k_b, (1, OUT_CHANNELS))
    adj_dense = _build_normalized_adjacency(N_NODES)       # numpy f32
    seed = jnp.array([0], dtype=jnp.int32)

    # One-off adjacency preprocessing (bf16 cast, padding, block-CSR) hoisted
    # out of the jitted per-call path.
    n_pad, tm, tk = _pick_tiles(N_NODES)
    adj_p, col_idx, counts, max_blocks = prepare_adjacency(
        adj_dense, n_pad=n_pad, tm=tm, tk=tk)

    out = dense_ngcn_layer(adj_p, col_idx, counts, features, weight, bias, seed,
                           iterations=ITERATIONS,
                           dropout_rate=DROPOUT_RATE,
                           training=TRAINING,
                           tm=tm, tk=tk, max_blocks=max_blocks)
    out = jax.block_until_ready(out)

    # Host-side reference (eval mode), mirroring the kernel's bf16 adjacency
    # and bf16 inter-hop base storage (accumulation is f32 in both).
    feats_np = np.asarray(features, dtype=np.float32)
    w_np = np.asarray(weight, dtype=np.float32)
    b_np = np.asarray(bias, dtype=np.float32)
    adj_bf = np.asarray(jnp.asarray(adj_dense, jnp.bfloat16).astype(jnp.float32))
    ref = feats_np @ w_np
    for _ in range(ITERATIONS - 1):
        ref_bf = np.asarray(jnp.asarray(ref, jnp.bfloat16).astype(jnp.float32))
        ref = adj_bf @ ref_bf
    ref = ref + b_np

    np.testing.assert_allclose(np.asarray(out), ref, rtol=3e-3, atol=3e-3)
    assert out.shape == (N_NODES, OUT_CHANNELS)
    print("KERNEL_OK")
</pallas_src>

<mosaic_0001>
module attributes {stable_mosaic.version = 11 : i64} {
  func.func @kernel(%arg0: i32, %arg1: i32, %arg2: memref<1xi32, #tpu.memory_space<smem>>, %arg3: memref<1xi32, #tpu.memory_space<smem>>, %arg4: memref<128x128xbf16, #tpu.memory_space<vmem>>, %arg5: memref<128x128xbf16, #tpu.memory_space<vmem>>, %arg6: memref<128x128xbf16, #tpu.memory_space<vmem>>, %arg7: memref<128x128xf32, #tpu.memory_space<vmem>>) attributes {dimension_semantics = [#tpu.dimension_semantics<parallel>, #tpu.dimension_semantics<arbitrary>], iteration_bounds = array<i64: 1, 1>, scalar_prefetch = 2 : i64, scratch_operands = 1 : i64, tpu.core_type = #tpu.core_type<tc>, window_params = [{transform_indices = @transform_0, window_bounds = array<i64: 128, 128>}, {transform_indices = @transform_1, window_bounds = array<i64: 128, 128>}, {transform_indices = @transform_2, window_bounds = array<i64: 128, 128>}]} {
    %c0_i32 = arith.constant 0 : i32
    %0 = arith.cmpi eq, %arg1, %c0_i32 : i32
    %1 = arith.extui %0 : i1 to i32
    %c0_i32_0 = arith.constant 0 : i32
    %2 = arith.cmpi ne, %1, %c0_i32_0 : i32
    scf.if %2 {
      %cst = arith.constant 0.000000e+00 : f32
      %11 = vector.broadcast %cst : f32 to vector<128x128xf32>
      %c0 = arith.constant 0 : index
      %c0_4 = arith.constant 0 : index
      %12 = vector.load %arg7[%c0, %c0_4] : memref<128x128xf32, #tpu.memory_space<vmem>>, vector<128x128xf32>
      tpu.vector_store %arg7[%c0, %c0_4], %11 {strides = array<i32>} : memref<128x128xf32, #tpu.memory_space<vmem>>, vector<128x128xf32>,
    } else {
    }
    %3 = arith.index_cast %arg0 : i32 to index
    %4 = memref.load %arg3[%3] : memref<1xi32, #tpu.memory_space<smem>>
    %5 = arith.cmpi slt, %arg1, %4 : i32
    %6 = arith.extui %5 : i1 to i32
    %c0_i32_1 = arith.constant 0 : i32
    %7 = arith.cmpi ne, %6, %c0_i32_1 : i32
    scf.if %7 {
      %c0 = arith.constant 0 : index
      %c0_4 = arith.constant 0 : index
      %11 = vector.load %arg7[%c0, %c0_4] : memref<128x128xf32, #tpu.memory_space<vmem>>, vector<128x128xf32>
      %c0_5 = arith.constant 0 : index
      %c0_6 = arith.constant 0 : index
      %12 = vector.load %arg4[%c0_5, %c0_6] : memref<128x128xbf16, #tpu.memory_space<vmem>>, vector<128x128xbf16>
      %c0_7 = arith.constant 0 : index
      %c0_8 = arith.constant 0 : index
      %13 = vector.load %arg5[%c0_7, %c0_8] : memref<128x128xbf16, #tpu.memory_space<vmem>>, vector<128x128xbf16>
      %cst = arith.constant dense<0.000000e+00> : vector<128x128xf32>
      %14 = tpu.matmul %12, %13, %cst {dimension_numbers = #tpu.dot_dimension_numbers<[1], [0], [0], [1], [0, 0, 1, 1], [], []>} : vector<128x128xbf16>, vector<128x128xbf16>, vector<128x128xf32> -> vector<128x128xf32>
      %15 = arith.addf %11, %14 : vector<128x128xf32>
      %c0_9 = arith.constant 0 : index
      %c0_10 = arith.constant 0 : index
      %16 = vector.load %arg7[%c0_9, %c0_10] : memref<128x128xf32, #tpu.memory_space<vmem>>, vector<128x128xf32>
      tpu.vector_store %arg7[%c0_9, %c0_10], %15 {strides = array<i32>} : memref<128x128xf32, #tpu.memory_space<vmem>>, vector<128x128xf32>,
    } else {
    }
    %c0_i32_2 = arith.constant 0 : i32
    %8 = arith.cmpi eq, %arg1, %c0_i32_2 : i32
    %9 = arith.extui %8 : i1 to i32
    %c0_i32_3 = arith.constant 0 : i32
    %10 = arith.cmpi ne, %9, %c0_i32_3 : i32
    scf.if %10 {
      %c0 = arith.constant 0 : index
      %c0_4 = arith.constant 0 : index
      %11 = vector.load %arg7[%c0, %c0_4] : memref<128x128xf32, #tpu.memory_space<vmem>>, vector<128x128xf32>
      %12 = arith.truncf %11 : vector<128x128xf32> to vector<128x128xbf16>
      %c0_5 = arith.constant 0 : index
      %c0_6 = arith.constant 0 : index
      %13 = vector.load %arg6[%c0_5, %c0_6] : memref<128x128xbf16, #tpu.memory_space<vmem>>, vector<128x128xbf16>
      tpu.vector_store %arg6[%c0_5, %c0_6], %12 {strides = array<i32>} : memref<128x128xbf16, #tpu.memory_space<vmem>>, vector<128x128xbf16>,
    } else {
    }
    return
  }
  func.func @transform_0(%arg0: i32, %arg1: i32, %arg2: memref<1xi32, #tpu.memory_space<smem>>, %arg3: memref<1xi32, #tpu.memory_space<smem>>) -> (i32, i32) {
    %c1_i32 = arith.constant 1 : i32
    %0 = arith.muli %arg0, %c1_i32 : i32
    %1 = arith.addi %0, %arg1 : i32
    %2 = arith.index_cast %1 : i32 to index
    %3 = memref.load %arg2[%2] : memref<1xi32, #tpu.memory_space<smem>>
    %c0_i32 = arith.constant 0 : i32
    return %arg0, %3 : i32, i32
  }
  func.func @transform_1(%arg0: i32, %arg1: i32, %arg2: memref<1xi32, #tpu.memory_space<smem>>, %arg3: memref<1xi32, #tpu.memory_space<smem>>) -> (i32, i32) {
    %c1_i32 = arith.constant 1 : i32
    %0 = arith.muli %arg0, %c1_i32 : i32
    %1 = arith.addi %0, %arg1 : i32
    %2 = arith.index_cast %1 : i32 to index
    %3 = memref.load %arg2[%2] : memref<1xi32, #tpu.memory_space<smem>>
    %c0_i32 = arith.constant 0 : i32
    %c0_i32_0 = arith.constant 0 : i32
    return %3, %c0_i32 : i32, i32
  }
  func.func @transform_2(%arg0: i32, %arg1: i32, %arg2: memref<1xi32, #tpu.memory_space<smem>>, %arg3: memref<1xi32, #tpu.memory_space<smem>>) -> (i32, i32) {
    %c0_i32 = arith.constant 0 : i32
    %c0_i32_0 = arith.constant 0 : i32
    return %arg0, %c0_i32 : i32, i32
  }
}

module attributes {stable_mosaic.version = 11 : i64} {
  func.func @kernel(%arg0: i32, %arg1: memref<1xi32, #tpu.memory_space<smem>>, %arg2: memref<128x32xf32, #tpu.memory_space<vmem>>, %arg3: memref<32x128xf32, #tpu.memory_space<vmem>>, %arg4: memref<128x128xbf16, #tpu.memory_space<vmem>>) attributes {dimension_semantics = [#tpu.dimension_semantics<parallel>], iteration_bounds = array<i64: 1>, scalar_prefetch = 1 : i64, scratch_operands = 0 : i64, tpu.core_type = #tpu.core_type<tc>, window_params = [{transform_indices = @transform_0, window_bounds = array<i64: 128, 32>}, {pipeline_mode = #tpu.pipeline_mode<synchronous>, transform_indices = @transform_1, window_bounds = array<i64: 32, 128>}, {transform_indices = @transform_2, window_bounds = array<i64: 128, 128>}]} {
    %c0 = arith.constant 0 : index
    %c0_0 = arith.constant 0 : index
    %0 = vector.load %arg2[%c0, %c0_0] : memref<128x32xf32, #tpu.memory_space<vmem>>, vector<128x32xf32>
    %c0_1 = arith.constant 0 : index
    %c0_2 = arith.constant 0 : index
    %1 = vector.load %arg3[%c0_1, %c0_2] : memref<32x128xf32, #tpu.memory_space<vmem>>, vector<32x128xf32>
    %cst = arith.constant dense<0.000000e+00> : vector<128x128xf32>
    %2 = tpu.matmul %0, %1, %cst {dimension_numbers = #tpu.dot_dimension_numbers<[1], [0], [0], [1], [0, 0, 1, 1], [], []>} : vector<128x32xf32>, vector<32x128xf32>, vector<128x128xf32> -> vector<128x128xf32>
    %3 = arith.truncf %2 : vector<128x128xf32> to vector<128x128xbf16>
    %c0_3 = arith.constant 0 : index
    %c0_4 = arith.constant 0 : index
    %4 = vector.load %arg4[%c0_3, %c0_4] : memref<128x128xbf16, #tpu.memory_space<vmem>>, vector<128x128xbf16>
    tpu.vector_store %arg4[%c0_3, %c0_4], %3 {strides = array<i32>} : memref<128x128xbf16, #tpu.memory_space<vmem>>, vector<128x128xbf16>,
    return
  }
  func.func @transform_0(%arg0: i32, %arg1: memref<1xi32, #tpu.memory_space<smem>>) -> (i32, i32) {
    %c0_i32 = arith.constant 0 : i32
    %c0_i32_0 = arith.constant 0 : i32
    return %arg0, %c0_i32 : i32, i32
  }
  func.func @transform_1(%arg0: i32, %arg1: memref<1xi32, #tpu.memory_space<smem>>) -> (i32, i32) {
    %c0_i32 = arith.constant 0 : i32
    %c0_i32_0 = arith.constant 0 : i32
    %c0_i32_1 = arith.constant 0 : i32
    return %c0_i32, %c0_i32_0 : i32, i32
  }
  func.func @transform_2(%arg0: i32, %arg1: memref<1xi32, #tpu.memory_space<smem>>) -> (i32, i32) {
    %c0_i32 = arith.constant 0 : i32
    %c0_i32_0 = arith.constant 0 : i32
    return %arg0, %c0_i32 : i32, i32
  }
}

module attributes {stable_mosaic.version = 11 : i64} {
  func.func @kernel(%arg0: i32, %arg1: i32, %arg2: memref<1xi32, #tpu.memory_space<smem>>, %arg3: memref<1xi32, #tpu.memory_space<smem>>, %arg4: memref<128x128xbf16, #tpu.memory_space<vmem>>, %arg5: memref<128x128xbf16, #tpu.memory_space<vmem>>, %arg6: memref<1x128xf32, #tpu.memory_space<vmem>>, %arg7: memref<128x128xf32, #tpu.memory_space<vmem>>, %arg8: memref<128x128xf32, #tpu.memory_space<vmem>>) attributes {dimension_semantics = [#tpu.dimension_semantics<parallel>, #tpu.dimension_semantics<arbitrary>], iteration_bounds = array<i64: 1, 1>, scalar_prefetch = 2 : i64, scratch_operands = 1 : i64, tpu.core_type = #tpu.core_type<tc>, window_params = [{transform_indices = @transform_0, window_bounds = array<i64: 128, 128>}, {transform_indices = @transform_1, window_bounds = array<i64: 128, 128>}, {pipeline_mode = #tpu.pipeline_mode<synchronous>, transform_indices = @transform_2, window_bounds = array<i64: 1, 128>}, {transform_indices = @transform_3, window_bounds = array<i64: 128, 128>}]} {
    %c0_i32 = arith.constant 0 : i32
    %0 = arith.cmpi eq, %arg1, %c0_i32 : i32
    %1 = arith.extui %0 : i1 to i32
    %c0_i32_0 = arith.constant 0 : i32
    %2 = arith.cmpi ne, %1, %c0_i32_0 : i32
    scf.if %2 {
      %cst = arith.constant 0.000000e+00 : f32
      %11 = vector.broadcast %cst : f32 to vector<128x128xf32>
      %c0 = arith.constant 0 : index
      %c0_4 = arith.constant 0 : index
      %12 = vector.load %arg8[%c0, %c0_4] : memref<128x128xf32, #tpu.memory_space<vmem>>, vector<128x128xf32>
      tpu.vector_store %arg8[%c0, %c0_4], %11 {strides = array<i32>} : memref<128x128xf32, #tpu.memory_space<vmem>>, vector<128x128xf32>,
    } else {
    }
    %3 = arith.index_cast %arg0 : i32 to index
    %4 = memref.load %arg3[%3] : memref<1xi32, #tpu.memory_space<smem>>
    %5 = arith.cmpi slt, %arg1, %4 : i32
    %6 = arith.extui %5 : i1 to i32
    %c0_i32_1 = arith.constant 0 : i32
    %7 = arith.cmpi ne, %6, %c0_i32_1 : i32
    scf.if %7 {
      %c0 = arith.constant 0 : index
      %c0_4 = arith.constant 0 : index
      %11 = vector.load %arg8[%c0, %c0_4] : memref<128x128xf32, #tpu.memory_space<vmem>>, vector<128x128xf32>
      %c0_5 = arith.constant 0 : index
      %c0_6 = arith.constant 0 : index
      %12 = vector.load %arg4[%c0_5, %c0_6] : memref<128x128xbf16, #tpu.memory_space<vmem>>, vector<128x128xbf16>
      %c0_7 = arith.constant 0 : index
      %c0_8 = arith.constant 0 : index
      %13 = vector.load %arg5[%c0_7, %c0_8] : memref<128x128xbf16, #tpu.memory_space<vmem>>, vector<128x128xbf16>
      %cst = arith.constant dense<0.000000e+00> : vector<128x128xf32>
      %14 = tpu.matmul %12, %13, %cst {dimension_numbers = #tpu.dot_dimension_numbers<[1], [0], [0], [1], [0, 0, 1, 1], [], []>} : vector<128x128xbf16>, vector<128x128xbf16>, vector<128x128xf32> -> vector<128x128xf32>
      %15 = arith.addf %11, %14 : vector<128x128xf32>
      %c0_9 = arith.constant 0 : index
      %c0_10 = arith.constant 0 : index
      %16 = vector.load %arg8[%c0_9, %c0_10] : memref<128x128xf32, #tpu.memory_space<vmem>>, vector<128x128xf32>
      tpu.vector_store %arg8[%c0_9, %c0_10], %15 {strides = array<i32>} : memref<128x128xf32, #tpu.memory_space<vmem>>, vector<128x128xf32>,
    } else {
    }
    %c0_i32_2 = arith.constant 0 : i32
    %8 = arith.cmpi eq, %arg1, %c0_i32_2 : i32
    %9 = arith.extui %8 : i1 to i32
    %c0_i32_3 = arith.constant 0 : i32
    %10 = arith.cmpi ne, %9, %c0_i32_3 : i32
    scf.if %10 {
      %c0 = arith.constant 0 : index
      %c0_4 = arith.constant 0 : index
      %11 = vector.load %arg8[%c0, %c0_4] : memref<128x128xf32, #tpu.memory_space<vmem>>, vector<128x128xf32>
      %c0_5 = arith.constant 0 : index
      %c0_6 = arith.constant 0 : index
      %12 = vector.load %arg6[%c0_5, %c0_6] : memref<1x128xf32, #tpu.memory_space<vmem>>, vector<1x128xf32>
      %13 = vector.broadcast %12 : vector<1x128xf32> to vector<128x128xf32>
      %14 = arith.addf %11, %13 : vector<128x128xf32>
      %c0_7 = arith.constant 0 : index
      %c0_8 = arith.constant 0 : index
      %15 = vector.load %arg7[%c0_7, %c0_8] : memref<128x128xf32, #tpu.memory_space<vmem>>, vector<128x128xf32>
      tpu.vector_store %arg7[%c0_7, %c0_8], %14 {strides = array<i32>} : memref<128x128xf32, #tpu.memory_space<vmem>>, vector<128x128xf32>,
    } else {
    }
    return
  }
  func.func @transform_0(%arg0: i32, %arg1: i32, %arg2: memref<1xi32, #tpu.memory_space<smem>>, %arg3: memref<1xi32, #tpu.memory_space<smem>>) -> (i32, i32) {
    %c1_i32 = arith.constant 1 : i32
    %0 = arith.muli %arg0, %c1_i32 : i32
    %1 = arith.addi %0, %arg1 : i32
    %2 = arith.index_cast %1 : i32 to index
    %3 = memref.load %arg2[%2] : memref<1xi32, #tpu.memory_space<smem>>
    %c0_i32 = arith.constant 0 : i32
    return %arg0, %3 : i32, i32
  }
  func.func @transform_1(%arg0: i32, %arg1: i32, %arg2: memref<1xi32, #tpu.memory_space<smem>>, %arg3: memref<1xi32, #tpu.memory_space<smem>>) -> (i32, i32) {
    %c1_i32 = arith.constant 1 : i32
    %0 = arith.muli %arg0, %c1_i32 : i32
    %1 = arith.addi %0, %arg1 : i32
    %2 = arith.index_cast %1 : i32 to index
    %3 = memref.load %arg2[%2] : memref<1xi32, #tpu.memory_space<smem>>
    %c0_i32 = arith.constant 0 : i32
    %c0_i32_0 = arith.constant 0 : i32
    return %3, %c0_i32 : i32, i32
  }
  func.func @transform_2(%arg0: i32, %arg1: i32, %arg2: memref<1xi32, #tpu.memory_space<smem>>, %arg3: memref<1xi32, #tpu.memory_space<smem>>) -> (i32, i32) {
    %c0_i32 = arith.constant 0 : i32
    %c0_i32_0 = arith.constant 0 : i32
    %c0_i32_1 = arith.constant 0 : i32
    return %c0_i32, %c0_i32_0 : i32, i32
  }
  func.func @transform_3(%arg0: i32, %arg1: i32, %arg2: memref<1xi32, #tpu.memory_space<smem>>, %arg3: memref<1xi32, #tpu.memory_space<smem>>) -> (i32, i32) {
    %c0_i32 = arith.constant 0 : i32
    %c0_i32_0 = arith.constant 0 : i32
    return %arg0, %c0_i32 : i32, i32
  }
}

</mosaic_0001>

<llo_original>
// kernel: dense_ngcn_layer.3
$region0: #{dense_ngcn_layer.3}
  #allocation0 [shape = 'u32[]', space=smem, size = 0x4, offset = 0x4, fixed_abs, tag = 'smem constant byte address 0x4 - core index']
  #allocation1 [shape = 'u32[144,128]{1,0:T(1,128)}', space=vmem, size = 0x12000, scoped, tag = 'internal scratch']
  #allocation2 [shape = 's32[1]{0}', space=sflag, size = 0x4, scoped, tag = 'scoped memory for dense_ngcn_layer.3']
  #allocation3 [shape = 's32[1]{0:T(128)S(6)}', space=smem, size = 0x200, scoped, tag = 'prefetched SMEM operand 0']
  %s0 = inlined_call_operand.<no memory space> [shape: s32[1], index: 0, kind: input, shape index: {}]
  %s1 = inlined_call_operand.vmem [shape: f32[128,32], index: 1, kind: input, shape index: {}]
  %s2 = inlined_call_operand.vmem [shape: f32[32,128], index: 2, kind: input, shape index: {}]
  %s3 = inlined_call_operand.vmem [shape: bf16[128,128], index: 3, kind: output, shape index: {}]
  %s4 = sld [smem:[#allocation0]]
  $region18: #{dense_ngcn_layer.3} parent=0
    _
  %s6 = ssub.s32 1, %s4
  %s7 = scalar_select 0, %s6, %s4
  %8 = sst [smem:[#allocation3]] %s0
  // Predicated region
  $region2: #{dense_ngcn_layer.3} parent=0 // pred_check
    _
  $region3: #{dense_ngcn_layer.3} parent=0 // pred_check_branch
    %10 = sbr.rel (0) target = $region5
  $region4: #{dense_ngcn_layer.3} parent=0 // pred_region
    _
  $region5: #{dense_ngcn_layer.3} parent=0 // pred_fallthru
    _
  // Predicated region
  $region6: #{dense_ngcn_layer.3} parent=0 // pred_check
    _
  $region7: #{dense_ngcn_layer.3} parent=0 // pred_check_branch
    %12 = sbr.rel (0) target = $region9
  $region8: #{dense_ngcn_layer.3} parent=0 // pred_region
    _
  $region9: #{dense_ngcn_layer.3} parent=0 // pred_fallthru
    _
  %v13 = vld [vmem:[%s1] sm:$0xff]
  %v14 = vld [vmem:[%s1 + $0x8] sm:$0xff]
  %v15 = vld [vmem:[%s1 + $0x10] sm:$0xff]
  %v16 = vld [vmem:[%s1 + $0x18] sm:$0xff]
  %v17 = vld [vmem:[%s1 + $0x20] sm:$0xff]
  %v18 = vld [vmem:[%s1 + $0x28] sm:$0xff]
  %v19 = vld [vmem:[%s1 + $0x30] sm:$0xff]
  %v20 = vld [vmem:[%s1 + $0x38] sm:$0xff]
  %v21 = vld [vmem:[%s1 + $0x40] sm:$0xff]
  %v22 = vld [vmem:[%s1 + $0x48] sm:$0xff]
  %v23 = vld [vmem:[%s1 + $0x50] sm:$0xff]
  %v24 = vld [vmem:[%s1 + $0x58] sm:$0xff]
  %v25 = vld [vmem:[%s1 + $0x60] sm:$0xff]
  %v26 = vld [vmem:[%s1 + $0x68] sm:$0xff]
  %v27 = vld [vmem:[%s1 + $0x70] sm:$0xff]
  %v28 = vld [vmem:[%s1 + $0x78] sm:$0xff]
  %v29 = vld [vmem:[%s2] sm:$0xff]
  %v30 = vld [vmem:[%s2 + $0x8] sm:$0xff]
  %v31 = vld [vmem:[%s2 + $0x10] sm:$0xff]
  %v32 = vld [vmem:[%s2 + $0x18] sm:$0xff]
  %vm33 = vcmask 261120
  %v35 = vsel %vm33, %v13, 0
  %v38 = vsel %vm33, %v14, 0
  %v41 = vsel %vm33, %v15, 0
  %v44 = vsel %vm33, %v16, 0
  %v47 = vsel %vm33, %v17, 0
  %v50 = vsel %vm33, %v18, 0
  %v53 = vsel %vm33, %v19, 0
  %v56 = vsel %vm33, %v20, 0
  %v59 = vsel %vm33, %v21, 0
  %v62 = vsel %vm33, %v22, 0
  %v65 = vsel %vm33, %v23, 0
  %v68 = vsel %vm33, %v24, 0
  %v71 = vsel %vm33, %v25, 0
  %v74 = vsel %vm33, %v26, 0
  %v77 = vsel %vm33, %v27, 0
  %v80 = vsel %vm33, %v28, 0
  %82 = vmatprep.subr.mxu0 0.0
  %83 = vmatpush1.msra.mxu0 %v29
  %84 = vmatprep.subr.mxu0 0.0
  %85 = vmatpush1.msra.mxu0 %v30
  %86 = vmatprep.subr.mxu0 0.0
  %87 = vmatpush1.msra.mxu0 %v31
  %88 = vmatprep.subr.mxu0 0.0
  %89 = vmatpush1.msra.mxu0 %v32
  %90 = vmatprep.subr.mxu0 0.0
  %91 = vmatpush1.msra.mxu0 0.0
  %92 = vmatprep.subr.mxu0 0.0
  %93 = vmatpush1.msra.mxu0 0.0
  %94 = vmatprep.subr.mxu0 0.0
  %95 = vmatpush1.msra.mxu0 0.0
  %96 = vmatprep.subr.mxu0 0.0
  %97 = vmatpush1.msra.mxu0 0.0
  %98 = vmatprep.subr.mxu0 0.0
  %99 = vmatpush1.msra.mxu0 0.0
  %100 = vmatprep.subr.mxu0 0.0
  %101 = vmatpush1.msra.mxu0 0.0
  %102 = vmatprep.subr.mxu0 0.0
  %103 = vmatpush1.msra.mxu0 0.0
  %104 = vmatprep.subr.mxu0 0.0
  %105 = vmatpush1.msra.mxu0 0.0
  %106 = vmatprep.subr.mxu0 0.0
  %107 = vmatpush1.msra.mxu0 0.0
  %108 = vmatprep.subr.mxu0 0.0
  %109 = vmatpush1.msra.mxu0 0.0
  %110 = vmatprep.subr.mxu0 0.0
  %111 = vmatpush1.msra.mxu0 0.0
  %112 = vmatprep.subr.mxu0 0.0
  %113 = vmatpush1.msra.mxu0 0.0
  %114 = vmatprep.subr.mxu0 0.0
  %115 = vmatpush1.msra.mxu0 0.0
  %116 = vmatprep.subr.mxu0 0.0
  %117 = vmatpush1.msra.mxu0 0.0
  %118 = vmatprep.subr.mxu0 0.0
  %119 = vmatpush1.msra.mxu0 0.0
  %120 = vmatprep.subr.mxu0 0.0
  %121 = vmatpush1.msra.mxu0 0.0
  %122 = vmatprep.subr.mxu0 0.0
  %123 = vmatpush1.msra.mxu0 0.0
  %124 = vmatprep.subr.mxu0 0.0
  %125 = vmatpush1.msra.mxu0 0.0
  %126 = vmatprep.subr.mxu0 0.0
  %127 = vmatpush1.msra.mxu0 0.0
  %128 = vmatprep.subr.mxu0 0.0
  %129 = vmatpush1.msra.mxu0 0.0
  %130 = vmatprep.subr.mxu0 0.0
  %131 = vmatpush1.msra.mxu0 0.0
  %132 = vmatprep.subr.mxu0 0.0
  %133 = vmatpush1.msra.mxu0 0.0
  %134 = vmatprep.subr.mxu0 0.0
  %135 = vmatpush1.msra.mxu0 0.0
  %136 = vmatprep.subr.mxu0 0.0
  %137 = vmatpush1.msra.mxu0 0.0
  %138 = vmatprep.subr.mxu0 0.0
  %139 = vmatpush1.msra.mxu0 0.0
  %140 = vmatprep.subr.mxu0 0.0
  %141 = vmatpush1.msra.mxu0 0.0
  %142 = vmatprep.subr.mxu0 0.0
  %143 = vmatpush1.msra.mxu0 0.0
  %144 = vmatprep.subr.mxu0 0.0
  %145 = vmatpush1.msra.mxu0 0.0
  %146 = vmatprep.mubr.f32.mxu0 0.0
  %147 = vmatmul.mubr.f32.gmra.mrb[0].mxu0 %v35
  %v148 = vpop.f32.mrb[0].mxu0
  %v149 = vadd.f32 0.0, %v148
  %v150 = vpop.f32.mrb[0].mxu0
  %151 = vmatprep.mubr.f32.mxu0 0.0
  %152 = vmatmul.mubr.f32.gmra.mrb[0].mxu0 %v38
  %v153 = vpop.f32.mrb[0].mxu0
  %v154 = vadd.f32 0.0, %v153
  %v155 = vpop.f32.mrb[0].mxu0
  %156 = vmatprep.mubr.f32.mxu0 0.0
  %157 = vmatmul.mubr.f32.gmra.mrb[0].mxu0 %v41
  %v158 = vpop.f32.mrb[0].mxu0
  %v159 = vadd.f32 0.0, %v158
  %v160 = vpop.f32.mrb[0].mxu0
  %161 = vmatprep.mubr.f32.mxu0 0.0
  %162 = vmatmul.mubr.f32.gmra.mrb[0].mxu0 %v44
  %v163 = vpop.f32.mrb[0].mxu0
  %v164 = vadd.f32 0.0, %v163
  %v165 = vpop.f32.mrb[0].mxu0
  %166 = vmatprep.mubr.f32.mxu0 0.0
  %167 = vmatmul.mubr.f32.gmra.mrb[0].mxu0 %v47
  %v168 = vpop.f32.mrb[0].mxu0
  %v169 = vadd.f32 0.0, %v168
  %v170 = vpop.f32.mrb[0].mxu0
  %171 = vmatprep.mubr.f32.mxu0 0.0
  %172 = vmatmul.mubr.f32.gmra.mrb[0].mxu0 %v50
  %v173 = vpop.f32.mrb[0].mxu0
  %v174 = vadd.f32 0.0, %v173
  %v175 = vpop.f32.mrb[0].mxu0
  %176 = vmatprep.mubr.f32.mxu0 0.0
  %177 = vmatmul.mubr.f32.gmra.mrb[0].mxu0 %v53
  %v178 = vpop.f32.mrb[0].mxu0
  %v179 = vadd.f32 0.0, %v178
  %v180 = vpop.f32.mrb[0].mxu0
  %181 = vmatprep.mubr.f32.mxu0 0.0
  %182 = vmatmul.mubr.f32.gmra.mrb[0].mxu0 %v56
  %v183 = vpop.f32.mrb[0].mxu0
  %v184 = vadd.f32 0.0, %v183
  %v185 = vpop.f32.mrb[0].mxu0
  %186 = vmatprep.mubr.f32.mxu0 0.0
  %187 = vmatmul.mubr.f32.gmra.mrb[0].mxu0 %v59
  %v188 = vpop.f32.mrb[0].mxu0
  %v189 = vadd.f32 0.0, %v188
  %v190 = vpop.f32.mrb[0].mxu0
  %191 = vmatprep.mubr.f32.mxu0 0.0
  %192 = vmatmul.mubr.f32.gmra.mrb[0].mxu0 %v62
  %v193 = vpop.f32.mrb[0].mxu0
  %v194 = vadd.f32 0.0, %v193
  %v195 = vpop.f32.mrb[0].mxu0
  %196 = vmatprep.mubr.f32.mxu0 0.0
  %197 = vmatmul.mubr.f32.gmra.mrb[0].mxu0 %v65
  %v198 = vpop.f32.mrb[0].mxu0
  %v199 = vadd.f32 0.0, %v198
  %v200 = vpop.f32.mrb[0].mxu0
  %201 = vmatprep.mubr.f32.mxu0 0.0
  %202 = vmatmul.mubr.f32.gmra.mrb[0].mxu0 %v68
  %v203 = vpop.f32.mrb[0].mxu0
  %v204 = vadd.f32 0.0, %v203
  %v205 = vpop.f32.mrb[0].mxu0
  %206 = vmatprep.mubr.f32.mxu0 0.0
  %207 = vmatmul.mubr.f32.gmra.mrb[0].mxu0 %v71
  %v208 = vpop.f32.mrb[0].mxu0
  %v209 = vadd.f32 0.0, %v208
  %v210 = vpop.f32.mrb[0].mxu0
  %211 = vmatprep.mubr.f32.mxu0 0.0
  %212 = vmatmul.mubr.f32.gmra.mrb[0].mxu0 %v74
  %v213 = vpop.f32.mrb[0].mxu0
  %v214 = vadd.f32 0.0, %v213
  %v215 = vpop.f32.mrb[0].mxu0
  %216 = vmatprep.mubr.f32.mxu0 0.0
  %217 = vmatmul.mubr.f32.gmra.mrb[0].mxu0 %v77
  %v218 = vpop.f32.mrb[0].mxu0
  %v219 = vadd.f32 0.0, %v218
  %v220 = vpop.f32.mrb[0].mxu0
  %221 = vmatprep.mubr.f32.mxu0 0.0
  %222 = vmatmul.mubr.f32.gmra.mrb[0].mxu0 %v80
  %v223 = vpop.f32.mrb[0].mxu0
  %v224 = vadd.f32 0.0, %v223
  %v225 = vpop.f32.mrb[0].mxu0
  %226 = vdwg.mxu0
  %v227 = vpack.c.bf16 %v154, %v149
  %v228 = vpack.c.bf16 %v164, %v159
  %v229 = vpack.c.bf16 %v174, %v169
  %v230 = vpack.c.bf16 %v184, %v179
  %v231 = vpack.c.bf16 %v194, %v189
  %v232 = vpack.c.bf16 %v204, %v199
  %v233 = vpack.c.bf16 %v214, %v209
  %v234 = vpack.c.bf16 %v224, %v219
  %v243 = vunpack.c.l.b16 %v227
  %v244 = vunpack.c.h.b16 %v227
  %v245 = vunpack.c.l.b16 %v228
  %v246 = vunpack.c.h.b16 %v228
  %v247 = vunpack.c.l.b16 %v229
  %v248 = vunpack.c.h.b16 %v229
  %v249 = vunpack.c.l.b16 %v230
  %v250 = vunpack.c.h.b16 %v230
  %v251 = vunpack.c.l.b16 %v231
  %v252 = vunpack.c.h.b16 %v231
  %v253 = vunpack.c.l.b16 %v232
  %v254 = vunpack.c.h.b16 %v232
  %v255 = vunpack.c.l.b16 %v233
  %v256 = vunpack.c.h.b16 %v233
  %v257 = vunpack.c.l.b16 %v234
  %v258 = vunpack.c.h.b16 %v234
  %v259 = vpack.c.b16 %v243, %v243
  %v260 = vpack.c.b16 %v244, %v244
  %v261 = vpack.c.b16 %v245, %v245
  %v262 = vpack.c.b16 %v246, %v246
  %v263 = vpack.c.b16 %v247, %v247
  %v264 = vpack.c.b16 %v248, %v248
  %v265 = vpack.c.b16 %v249, %v249
  %v266 = vpack.c.b16 %v250, %v250
  %v267 = vpack.c.b16 %v251, %v251
  %v268 = vpack.c.b16 %v252, %v252
  %v269 = vpack.c.b16 %v253, %v253
  %v270 = vpack.c.b16 %v254, %v254
  %v271 = vpack.c.b16 %v255, %v255
  %v272 = vpack.c.b16 %v256, %v256
  %v273 = vpack.c.b16 %v257, %v257
  %v274 = vpack.c.b16 %v258, %v258
  %291 = vst [vmem:[%s3] sm:$0xf] %v259
  %292 = vst [vmem:[%s3 + $0x4] sm:$0xf] %v260
  %293 = vst [vmem:[%s3 + $0x8] sm:$0xf] %v261
  %294 = vst [vmem:[%s3 + $0xc] sm:$0xf] %v262
  %295 = vst [vmem:[%s3 + $0x10] sm:$0xf] %v263
  %296 = vst [vmem:[%s3 + $0x14] sm:$0xf] %v264
  %297 = vst [vmem:[%s3 + $0x18] sm:$0xf] %v265
  %298 = vst [vmem:[%s3 + $0x1c] sm:$0xf] %v266
  %299 = vst [vmem:[%s3 + $0x20] sm:$0xf] %v267
  %300 = vst [vmem:[%s3 + $0x24] sm:$0xf] %v268
  %301 = vst [vmem:[%s3 + $0x28] sm:$0xf] %v269
  %302 = vst [vmem:[%s3 + $0x2c] sm:$0xf] %v270
  %303 = vst [vmem:[%s3 + $0x30] sm:$0xf] %v271
  %304 = vst [vmem:[%s3 + $0x34] sm:$0xf] %v272
  %305 = vst [vmem:[%s3 + $0x38] sm:$0xf] %v273
  %306 = vst [vmem:[%s3 + $0x3c] sm:$0xf] %v274
  // Predicated region
  $region10: #{dense_ngcn_layer.3} parent=0 // pred_check
    _
  $region11: #{dense_ngcn_layer.3} parent=0 // pred_check_branch
    %308 = sbr.rel (0) target = $region13
  $region12: #{dense_ngcn_layer.3} parent=0 // pred_region
    _
  $region13: #{dense_ngcn_layer.3} parent=0 // pred_fallthru
    _
  // Predicated region
  $region14: #{dense_ngcn_layer.3} parent=0 // pred_check
    _
  $region15: #{dense_ngcn_layer.3} parent=0 // pred_check_branch
    %310 = sbr.rel (0) target = $region17
  $region16: #{dense_ngcn_layer.3} parent=0 // pred_region
    _
  $region17: #{dense_ngcn_layer.3} parent=0 // pred_fallthru
    _

// kernel: dense_ngcn_layer.4
$region0: #{dense_ngcn_layer.4}
  #allocation0 [shape = 'u32[]', space=smem, size = 0x4, offset = 0x4, fixed_abs, tag = 'smem constant byte address 0x4 - core index']
  #allocation1 [shape = 'u32[144,128]{1,0:T(1,128)}', space=vmem, size = 0x12000, scoped, tag = 'internal scratch']
  #allocation2 [shape = 'f32[128,128]{1,0:T(8,128)}', space=vmem, size = 0x10000, scoped, tag = 'scratch operand']
  #allocation3 [shape = 's32[1]{0}', space=sflag, size = 0x4, scoped, tag = 'scoped memory for dense_ngcn_layer.4']
  #allocation4 [shape = 's32[1]{0:T(128)S(6)}', space=smem, size = 0x200, scoped, tag = 'prefetched SMEM operand 0']
  #allocation5 [shape = 's32[1]{0:T(128)S(6)}', space=smem, size = 0x200, scoped, tag = 'prefetched SMEM operand 1']
  %s0 = inlined_call_operand.<no memory space> [shape: s32[1], index: 0, kind: input, shape index: {}]
  %s1 = inlined_call_operand.<no memory space> [shape: s32[1], index: 1, kind: input, shape index: {}]
  %s2 = inlined_call_operand.vmem [shape: bf16[128,128], index: 2, kind: input, shape index: {}]
  %s3 = inlined_call_operand.vmem [shape: bf16[128,128], index: 3, kind: input, shape index: {}]
  %s4 = inlined_call_operand.vmem [shape: bf16[128,128], index: 4, kind: output, shape index: {}]
  %s5 = sld [smem:[#allocation0]]
  $region30: #{dense_ngcn_layer.4} parent=0
    _
  %s7 = ssub.s32 1, %s5
  %s8 = scalar_select 0, %s7, %s5
  %9 = sst [smem:[#allocation4]] %s0
  %10 = sst [smem:[#allocation5]] %s1
  // Predicated region
  $region2: #{dense_ngcn_layer.4} parent=0 // pred_check
    _
  $region3: #{dense_ngcn_layer.4} parent=0 // pred_check_branch
    %12 = sbr.rel (0) target = $region5
  $region4: #{dense_ngcn_layer.4} parent=0 // pred_region
    %s13 = sadd.s32 0, 0
    %s14 = sld [smem:[#allocation4 + %s13]]
    %p15 = scmp.lt.s32.totalorder %s14, 0
    %s16 = scalar_select %p15, %s14, 0
    %s17 = smul.addr %s16, 4
    %s18 = scalar_lea.vmem %s2, %s17
    %s19 = sadd.s32 0, 0
    %s20 = sld [smem:[#allocation4 + %s19]]
  $region5: #{dense_ngcn_layer.4} parent=0 // pred_fallthru
    _
  // Predicated region
  $region6: #{dense_ngcn_layer.4} parent=0 // pred_check
    _
  $region7: #{dense_ngcn_layer.4} parent=0 // pred_check_branch
    %22 = sbr.rel (0) target = $region9
  $region8: #{dense_ngcn_layer.4} parent=0 // pred_region
    %s23 = sadd.s32 0, 0
    %s24 = sld [smem:[#allocation4 + %s23]]
    %s25 = smul.u32 16, %s24
    %p26 = scmp.lt.s32.totalorder %s25, 15
    %s27 = scalar_select %p26, %s25, 15
    %s28 = smul.addr %s27, 4
    %s29 = scalar_lea.vmem %s3, %s28
    %s30 = sadd.s32 0, 0
    %s31 = sld [smem:[#allocation4 + %s30]]
    %s32 = smul.u32 16, %s31
  $region9: #{dense_ngcn_layer.4} parent=0 // pred_fallthru
    _
  %s33 = sadd.s32 0, 0
  %s34 = sld [smem:[#allocation4 + %s33]]
  %p35 = scmp.lt.s32.totalorder %s34, 0
  %s36 = scalar_select %p35, %s34, 0
  %s37 = smul.addr %s36, 4
  %s38 = scalar_lea.vmem %s2, %s37
  %s39 = sadd.s32 0, 0
  %s40 = sld [smem:[#allocation4 + %s39]]
  %s41 = smul.u32 16, %s40
  %p42 = scmp.lt.s32.totalorder %s41, 15
  %s43 = scalar_select %p42, %s41, 15
  %s44 = smul.addr %s43, 4
  %s45 = scalar_lea.vmem %s3, %s44
  %s46 = sadd.s32 0, 0
  %s47 = sld [smem:[#allocation4 + %s46]]
  %p48 = scmp.lt.s32.totalorder %s47, 0
  %s49 = scalar_select %p48, %s47, 0
  %s50 = smul.addr %s49, 4
  %s51 = scalar_lea.vmem %s2, %s50
  %s52 = sadd.s32 0, 0
  %s53 = sld [smem:[#allocation4 + %s52]]
  %s54 = sadd.s32 0, 0
  %s55 = sld [smem:[#allocation4 + %s54]]
  %s56 = smul.u32 16, %s55
  %p57 = scmp.lt.s32.totalorder %s56, 15
  %s58 = scalar_select %p57, %s56, 15
  %s59 = smul.addr %s58, 4
  %s60 = scalar_lea.vmem %s3, %s59
  %s61 = sadd.s32 0, 0
  %s62 = sld [smem:[#allocation4 + %s61]]
  %s63 = smul.u32 16, %s62
  %p65 = scmp.eq.s32.totalorder 0, 0
  // Predicated region
  $region10: #{dense_ngcn_layer.4} parent=0 // pred_check
    %p66 = pneg %p65
  $region11: #{dense_ngcn_layer.4} parent=0 // pred_check_branch
    %68 = sbr.rel (%p66) target = $region13
  $region12: #{dense_ngcn_layer.4} parent=0 // pred_region
    %69 = vst [vmem:[#allocation2] sm:$0xff] 0.0
    %70 = vst [vmem:[#allocation2 + $0x8] sm:$0xff] 0.0
    %71 = vst [vmem:[#allocation2 + $0x10] sm:$0xff] 0.0
    %72 = vst [vmem:[#allocation2 + $0x18] sm:$0xff] 0.0
    %73 = vst [vmem:[#allocation2 + $0x20] sm:$0xff] 0.0
    %74 = vst [vmem:[#allocation2 + $0x28] sm:$0xff] 0.0
    %75 = vst [vmem:[#allocation2 + $0x30] sm:$0xff] 0.0
    %76 = vst [vmem:[#allocation2 + $0x38] sm:$0xff] 0.0
    %77 = vst [vmem:[#allocation2 + $0x40] sm:$0xff] 0.0
    %78 = vst [vmem:[#allocation2 + $0x48] sm:$0xff] 0.0
    %79 = vst [vmem:[#allocation2 + $0x50] sm:$0xff] 0.0
    %80 = vst [vmem:[#allocation2 + $0x58] sm:$0xff] 0.0
    %81 = vst [vmem:[#allocation2 + $0x60] sm:$0xff] 0.0
    %82 = vst [vmem:[#allocation2 + $0x68] sm:$0xff] 0.0
    %83 = vst [vmem:[#allocation2 + $0x70] sm:$0xff] 0.0
    %84 = vst [vmem:[#allocation2 + $0x78] sm:$0xff] 0.0
  $region13: #{dense_ngcn_layer.4} parent=0 // pred_fallthru
    _
  %s85 = sld [smem:[#allocation5]]
  %p86 = scmp.lt.s32.totalorder 0, %s85
  // Predicated region
  $region14: #{dense_ngcn_layer.4} parent=0 // pred_check
    %p87 = pneg %p86
  $region15: #{dense_ngcn_layer.4} parent=0 // pred_check_branch
    %89 = sbr.rel (%p87) target = $region17
  $region16: #{dense_ngcn_layer.4} parent=0 // pred_region
    %v90 = vld [vmem:[#allocation2] sm:$0xff]
    %v91 = vld [vmem:[#allocation2 + $0x8] sm:$0xff]
    %v92 = vld [vmem:[#allocation2 + $0x10] sm:$0xff]
    %v93 = vld [vmem:[#allocation2 + $0x18] sm:$0xff]
    %v94 = vld [vmem:[#allocation2 + $0x20] sm:$0xff]
    %v95 = vld [vmem:[#allocation2 + $0x28] sm:$0xff]
    %v96 = vld [vmem:[#allocation2 + $0x30] sm:$0xff]
    %v97 = vld [vmem:[#allocation2 + $0x38] sm:$0xff]
    %v98 = vld [vmem:[#allocation2 + $0x40] sm:$0xff]
    %v99 = vld [vmem:[#allocation2 + $0x48] sm:$0xff]
    %v100 = vld [vmem:[#allocation2 + $0x50] sm:$0xff]
    %v101 = vld [vmem:[#allocation2 + $0x58] sm:$0xff]
    %v102 = vld [vmem:[#allocation2 + $0x60] sm:$0xff]
    %v103 = vld [vmem:[#allocation2 + $0x68] sm:$0xff]
    %v104 = vld [vmem:[#allocation2 + $0x70] sm:$0xff]
    %v105 = vld [vmem:[#allocation2 + $0x78] sm:$0xff]
    %v106 = vld [vmem:[%s51] sm:$0xf]
    %v107 = vld [vmem:[%s51 + $0x4] sm:$0xf]
    %v108 = vld [vmem:[%s51 + $0x8] sm:$0xf]
    %v109 = vld [vmem:[%s51 + $0xc] sm:$0xf]
    %v110 = vld [vmem:[%s51 + $0x10] sm:$0xf]
    %v111 = vld [vmem:[%s51 + $0x14] sm:$0xf]
    %v112 = vld [vmem:[%s51 + $0x18] sm:$0xf]
    %v113 = vld [vmem:[%s51 + $0x1c] sm:$0xf]
    %v114 = vld [vmem:[%s51 + $0x20] sm:$0xf]
    %v115 = vld [vmem:[%s51 + $0x24] sm:$0xf]
    %v116 = vld [vmem:[%s51 + $0x28] sm:$0xf]
    %v117 = vld [vmem:[%s51 + $0x2c] sm:$0xf]
    %v118 = vld [vmem:[%s51 + $0x30] sm:$0xf]
    %v119 = vld [vmem:[%s51 + $0x34] sm:$0xf]
    %v120 = vld [vmem:[%s51 + $0x38] sm:$0xf]
    %v121 = vld [vmem:[%s51 + $0x3c] sm:$0xf]
    %v122 = vld [vmem:[%s60] sm:$0xf]
    %v123 = vld [vmem:[%s60 + $0x4] sm:$0xf]
    %v124 = vld [vmem:[%s60 + $0x8] sm:$0xf]
    %v125 = vld [vmem:[%s60 + $0xc] sm:$0xf]
    %v126 = vld [vmem:[%s60 + $0x10] sm:$0xf]
    %v127 = vld [vmem:[%s60 + $0x14] sm:$0xf]
    %v128 = vld [vmem:[%s60 + $0x18] sm:$0xf]
    %v129 = vld [vmem:[%s60 + $0x1c] sm:$0xf]
    %v130 = vld [vmem:[%s60 + $0x20] sm:$0xf]
    %v131 = vld [vmem:[%s60 + $0x24] sm:$0xf]
    %v132 = vld [vmem:[%s60 + $0x28] sm:$0xf]
    %v133 = vld [vmem:[%s60 + $0x2c] sm:$0xf]
    %v134 = vld [vmem:[%s60 + $0x30] sm:$0xf]
    %v135 = vld [vmem:[%s60 + $0x34] sm:$0xf]
    %v136 = vld [vmem:[%s60 + $0x38] sm:$0xf]
    %v137 = vld [vmem:[%s60 + $0x3c] sm:$0xf]
    %v154 = vunpack.c.l.b16 %v106
    %v155 = vunpack.c.l.b16 %v107
    %v156 = vunpack.c.l.b16 %v108
    %v157 = vunpack.c.l.b16 %v109
    %v158 = vunpack.c.l.b16 %v110
    %v159 = vunpack.c.l.b16 %v111
    %v160 = vunpack.c.l.b16 %v112
    %v161 = vunpack.c.l.b16 %v113
    %v162 = vunpack.c.l.b16 %v114
    %v163 = vunpack.c.l.b16 %v115
    %v164 = vunpack.c.l.b16 %v116
    %v165 = vunpack.c.l.b16 %v117
    %v166 = vunpack.c.l.b16 %v118
    %v167 = vunpack.c.l.b16 %v119
    %v168 = vunpack.c.l.b16 %v120
    %v169 = vunpack.c.l.b16 %v121
    %v170 = vpack.c.b16 %v155, %v154
    %v171 = vpack.c.b16 %v157, %v156
    %v172 = vpack.c.b16 %v159, %v158
    %v173 = vpack.c.b16 %v161, %v160
    %v174 = vpack.c.b16 %v163, %v162
    %v175 = vpack.c.b16 %v165, %v164
    %v176 = vpack.c.b16 %v167, %v166
    %v177 = vpack.c.b16 %v169, %v168
    %v202 = vunpack.c.l.b16 %v122
    %v203 = vunpack.c.l.b16 %v123
    %v204 = vunpack.c.l.b16 %v124
    %v205 = vunpack.c.l.b16 %v125
    %v206 = vunpack.c.l.b16 %v126
    %v207 = vunpack.c.l.b16 %v127
    %v208 = vunpack.c.l.b16 %v128
    %v209 = vunpack.c.l.b16 %v129
    %v210 = vunpack.c.l.b16 %v130
    %v211 = vunpack.c.l.b16 %v131
    %v212 = vunpack.c.l.b16 %v132
    %v213 = vunpack.c.l.b16 %v133
    %v214 = vunpack.c.l.b16 %v134
    %v215 = vunpack.c.l.b16 %v135
    %v216 = vunpack.c.l.b16 %v136
    %v217 = vunpack.c.l.b16 %v137
    %v218 = vpack.c.b16 %v203, %v202
    %v219 = vpack.c.b16 %v205, %v204
    %v220 = vpack.c.b16 %v207, %v206
    %v221 = vpack.c.b16 %v209, %v208
    %v222 = vpack.c.b16 %v211, %v210
    %v223 = vpack.c.b16 %v213, %v212
    %v224 = vpack.c.b16 %v215, %v214
    %v225 = vpack.c.b16 %v217, %v216
    %234 = vmatprep.subr.bf16.mxu0 0
    %235 = vmatpush1.bf16.msra.mxu0 %v218
    %236 = vmatprep.subr.bf16.mxu0 0
    %237 = vmatpush1.bf16.msra.mxu0 %v219
    %238 = vmatprep.subr.bf16.mxu0 0
    %239 = vmatpush1.bf16.msra.mxu0 %v220
    %240 = vmatprep.subr.bf16.mxu0 0
    %241 = vmatpush1.bf16.msra.mxu0 %v221
    %242 = vmatprep.subr.bf16.mxu0 0
    %243 = vmatpush1.bf16.msra.mxu0 %v222
    %244 = vmatprep.subr.bf16.mxu0 0
    %245 = vmatpush1.bf16.msra.mxu0 %v223
    %246 = vmatprep.subr.bf16.mxu0 0
    %247 = vmatpush1.bf16.msra.mxu0 %v224
    %248 = vmatprep.subr.bf16.mxu0 0
    %249 = vmatpush1.bf16.msra.mxu0 %v225
    %250 = vmatprep.subr.bf16.mxu0 0
    %251 = vmatpush1.bf16.msra.mxu0 0
    %252 = vmatprep.subr.bf16.mxu0 0
    %253 = vmatpush1.bf16.msra.mxu0 0
    %254 = vmatprep.subr.bf16.mxu0 0
    %255 = vmatpush1.bf16.msra.mxu0 0
    %256 = vmatprep.subr.bf16.mxu0 0
    %257 = vmatpush1.bf16.msra.mxu0 0
    %258 = vmatprep.subr.bf16.mxu0 0
    %259 = vmatpush1.bf16.msra.mxu0 0
    %260 = vmatprep.subr.bf16.mxu0 0
    %261 = vmatpush1.bf16.msra.mxu0 0
    %262 = vmatprep.subr.bf16.mxu0 0
    %263 = vmatpush1.bf16.msra.mxu0 0
    %264 = vmatprep.subr.bf16.mxu0 0
    %265 = vmatpush1.bf16.msra.mxu0 0
    %266 = vmatprep.mubr.bf16.mxu0 0
    %267 = vmatmul.mubr.bf16.gmra.mrb[0].mxu0 %v170
    %v268 = vpop.f32.mrb[0].mxu0
    %v269 = vadd.f32 0.0, %v268
    %v270 = vpop.f32.mrb[0].mxu0
    %v271 = vpop.f32.mrb[0].mxu0
    %v272 = vadd.f32 0.0, %v271
    %v273 = vpop.f32.mrb[0].mxu0
    %274 = vmatprep.mubr.bf16.mxu0 0
    %275 = vmatmul.mubr.bf16.gmra.mrb[0].mxu0 %v171
    %v276 = vpop.f32.mrb[0].mxu0
    %v277 = vadd.f32 0.0, %v276
    %v278 = vpop.f32.mrb[0].mxu0
    %v279 = vpop.f32.mrb[0].mxu0
    %v280 = vadd.f32 0.0, %v279
    %v281 = vpop.f32.mrb[0].mxu0
    %282 = vmatprep.mubr.bf16.mxu0 0
    %283 = vmatmul.mubr.bf16.gmra.mrb[0].mxu0 %v172
    %v284 = vpop.f32.mrb[0].mxu0
    %v285 = vadd.f32 0.0, %v284
    %v286 = vpop.f32.mrb[0].mxu0
    %v287 = vpop.f32.mrb[0].mxu0
    %v288 = vadd.f32 0.0, %v287
    %v289 = vpop.f32.mrb[0].mxu0
    %290 = vmatprep.mubr.bf16.mxu0 0
    %291 = vmatmul.mubr.bf16.gmra.mrb[0].mxu0 %v173
    %v292 = vpop.f32.mrb[0].mxu0
    %v293 = vadd.f32 0.0, %v292
    %v294 = vpop.f32.mrb[0].mxu0
    %v295 = vpop.f32.mrb[0].mxu0
    %v296 = vadd.f32 0.0, %v295
    %v297 = vpop.f32.mrb[0].mxu0
    %298 = vmatprep.mubr.bf16.mxu0 0
    %299 = vmatmul.mubr.bf16.gmra.mrb[0].mxu0 %v174
    %v300 = vpop.f32.mrb[0].mxu0
    %v301 = vadd.f32 0.0, %v300
    %v302 = vpop.f32.mrb[0].mxu0
    %v303 = vpop.f32.mrb[0].mxu0
    %v304 = vadd.f32 0.0, %v303
    %v305 = vpop.f32.mrb[0].mxu0
    %306 = vmatprep.mubr.bf16.mxu0 0
    %307 = vmatmul.mubr.bf16.gmra.mrb[0].mxu0 %v175
    %v308 = vpop.f32.mrb[0].mxu0
    %v309 = vadd.f32 0.0, %v308
    %v310 = vpop.f32.mrb[0].mxu0
    %v311 = vpop.f32.mrb[0].mxu0
    %v312 = vadd.f32 0.0, %v311
    %v313 = vpop.f32.mrb[0].mxu0
    %314 = vmatprep.mubr.bf16.mxu0 0
    %315 = vmatmul.mubr.bf16.gmra.mrb[0].mxu0 %v176
    %v316 = vpop.f32.mrb[0].mxu0
    %v317 = vadd.f32 0.0, %v316
    %v318 = vpop.f32.mrb[0].mxu0
    %v319 = vpop.f32.mrb[0].mxu0
    %v320 = vadd.f32 0.0, %v319
    %v321 = vpop.f32.mrb[0].mxu0
    %322 = vmatprep.mubr.bf16.mxu0 0
    %323 = vmatmul.mubr.bf16.gmra.mrb[0].mxu0 %v177
    %v324 = vpop.f32.mrb[0].mxu0
    %v325 = vadd.f32 0.0, %v324
    %v326 = vpop.f32.mrb[0].mxu0
    %v327 = vpop.f32.mrb[0].mxu0
    %v328 = vadd.f32 0.0, %v327
    %v329 = vpop.f32.mrb[0].mxu0
    %330 = vdwg.mxu0
    %v331 = vadd.f32 %v90, %v269
    %v332 = vadd.f32 %v91, %v272
    %v333 = vadd.f32 %v92, %v277
    %v334 = vadd.f32 %v93, %v280
    %v335 = vadd.f32 %v94, %v285
    %v336 = vadd.f32 %v95, %v288
    %v337 = vadd.f32 %v96, %v293
    %v338 = vadd.f32 %v97, %v296
    %v339 = vadd.f32 %v98, %v301
    %v340 = vadd.f32 %v99, %v304
    %v341 = vadd.f32 %v100, %v309
    %v342 = vadd.f32 %v101, %v312
    %v343 = vadd.f32 %v102, %v317
    %v344 = vadd.f32 %v103, %v320
    %v345 = vadd.f32 %v104, %v325
    %v346 = vadd.f32 %v105, %v328
    %347 = vst [vmem:[#allocation2] sm:$0xff] %v331
    %348 = vst [vmem:[#allocation2 + $0x8] sm:$0xff] %v332
    %349 = vst [vmem:[#allocation2 + $0x10] sm:$0xff] %v333
    %350 = vst [vmem:[#allocation2 + $0x18] sm:$0xff] %v334
    %351 = vst [vmem:[#allocation2 + $0x20] sm:$0xff] %v335
    %352 = vst [vmem:[#allocation2 + $0x28] sm:$0xff] %v336
    %353 = vst [vmem:[#allocation2 + $0x30] sm:$0xff] %v337
    %354 = vst [vmem:[#allocation2 + $0x38] sm:$0xff] %v338
    %355 = vst [vmem:[#allocation2 + $0x40] sm:$0xff] %v339
    %356 = vst [vmem:[#allocation2 + $0x48] sm:$0xff] %v340
    %357 = vst [vmem:[#allocation2 + $0x50] sm:$0xff] %v341
    %358 = vst [vmem:[#allocation2 + $0x58] sm:$0xff] %v342
    %359 = vst [vmem:[#allocation2 + $0x60] sm:$0xff] %v343
    %360 = vst [vmem:[#allocation2 + $0x68] sm:$0xff] %v344
    %361 = vst [vmem:[#allocation2 + $0x70] sm:$0xff] %v345
    %362 = vst [vmem:[#allocation2 + $0x78] sm:$0xff] %v346
  $region17: #{dense_ngcn_layer.4} parent=0 // pred_fallthru
    _
  // Predicated region
  $region18: #{dense_ngcn_layer.4} parent=0 // pred_check
    %p363 = pneg %p65
  $region19: #{dense_ngcn_layer.4} parent=0 // pred_check_branch
    %365 = sbr.rel (%p363) target = $region21
  $region20: #{dense_ngcn_layer.4} parent=0 // pred_region
    %v366 = vld [vmem:[#allocation2] sm:$0xff]
    %v367 = vld [vmem:[#allocation2 + $0x8] sm:$0xff]
    %v368 = vld [vmem:[#allocation2 + $0x10] sm:$0xff]
    %v369 = vld [vmem:[#allocation2 + $0x18] sm:$0xff]
    %v370 = vld [vmem:[#allocation2 + $0x20] sm:$0xff]
    %v371 = vld [vmem:[#allocation2 + $0x28] sm:$0xff]
    %v372 = vld [vmem:[#allocation2 + $0x30] sm:$0xff]
    %v373 = vld [vmem:[#allocation2 + $0x38] sm:$0xff]
    %v374 = vld [vmem:[#allocation2 + $0x40] sm:$0xff]
    %v375 = vld [vmem:[#allocation2 + $0x48] sm:$0xff]
    %v376 = vld [vmem:[#allocation2 + $0x50] sm:$0xff]
    %v377 = vld [vmem:[#allocation2 + $0x58] sm:$0xff]
    %v378 = vld [vmem:[#allocation2 + $0x60] sm:$0xff]
    %v379 = vld [vmem:[#allocation2 + $0x68] sm:$0xff]
    %v380 = vld [vmem:[#allocation2 + $0x70] sm:$0xff]
    %v381 = vld [vmem:[#allocation2 + $0x78] sm:$0xff]
    %v382 = vpack.c.bf16 %v367, %v366
    %v383 = vpack.c.bf16 %v369, %v368
    %v384 = vpack.c.bf16 %v371, %v370
    %v385 = vpack.c.bf16 %v373, %v372
    %v386 = vpack.c.bf16 %v375, %v374
    %v387 = vpack.c.bf16 %v377, %v376
    %v388 = vpack.c.bf16 %v379, %v378
    %v389 = vpack.c.bf16 %v381, %v380
    %v398 = vunpack.c.l.b16 %v382
    %v399 = vunpack.c.h.b16 %v382
    %v400 = vunpack.c.l.b16 %v383
    %v401 = vunpack.c.h.b16 %v383
    %v402 = vunpack.c.l.b16 %v384
    %v403 = vunpack.c.h.b16 %v384
    %v404 = vunpack.c.l.b16 %v385
    %v405 = vunpack.c.h.b16 %v385
    %v406 = vunpack.c.l.b16 %v386
    %v407 = vunpack.c.h.b16 %v386
    %v408 = vunpack.c.l.b16 %v387
    %v409 = vunpack.c.h.b16 %v387
    %v410 = vunpack.c.l.b16 %v388
    %v411 = vunpack.c.h.b16 %v388
    %v412 = vunpack.c.l.b16 %v389
    %v413 = vunpack.c.h.b16 %v389
    %v414 = vpack.c.b16 %v398, %v398
    %v415 = vpack.c.b16 %v399, %v399
    %v416 = vpack.c.b16 %v400, %v400
    %v417 = vpack.c.b16 %v401, %v401
    %v418 = vpack.c.b16 %v402, %v402
    %v419 = vpack.c.b16 %v403, %v403
    %v420 = vpack.c.b16 %v404, %v404
    %v421 = vpack.c.b16 %v405, %v405
    %v422 = vpack.c.b16 %v406, %v406
    %v423 = vpack.c.b16 %v407, %v407
    %v424 = vpack.c.b16 %v408, %v408
    %v425 = vpack.c.b16 %v409, %v409
    %v426 = vpack.c.b16 %v410, %v410
    %v427 = vpack.c.b16 %v411, %v411
    %v428 = vpack.c.b16 %v412, %v412
    %v429 = vpack.c.b16 %v413, %v413
    %446 = vst [vmem:[%s4] sm:$0xf] %v414
    %447 = vst [vmem:[%s4 + $0x4] sm:$0xf] %v415
    %448 = vst [vmem:[%s4 + $0x8] sm:$0xf] %v416
    %449 = vst [vmem:[%s4 + $0xc] sm:$0xf] %v417
    %450 = vst [vmem:[%s4 + $0x10] sm:$0xf] %v418
    %451 = vst [vmem:[%s4 + $0x14] sm:$0xf] %v419
    %452 = vst [vmem:[%s4 + $0x18] sm:$0xf] %v420
    %453 = vst [vmem:[%s4 + $0x1c] sm:$0xf] %v421
    %454 = vst [vmem:[%s4 + $0x20] sm:$0xf] %v422
    %455 = vst [vmem:[%s4 + $0x24] sm:$0xf] %v423
    %456 = vst [vmem:[%s4 + $0x28] sm:$0xf] %v424
    %457 = vst [vmem:[%s4 + $0x2c] sm:$0xf] %v425
    %458 = vst [vmem:[%s4 + $0x30] sm:$0xf] %v426
    %459 = vst [vmem:[%s4 + $0x34] sm:$0xf] %v427
    %460 = vst [vmem:[%s4 + $0x38] sm:$0xf] %v428
    %461 = vst [vmem:[%s4 + $0x3c] sm:$0xf] %v429
  $region21: #{dense_ngcn_layer.4} parent=0 // pred_fallthru
    _
  // Predicated region
  $region22: #{dense_ngcn_layer.4} parent=0 // pred_check
    _
  $region23: #{dense_ngcn_layer.4} parent=0 // pred_check_branch
    %463 = sbr.rel (0) target = $region25
  $region24: #{dense_ngcn_layer.4} parent=0 // pred_region
    _
  $region25: #{dense_ngcn_layer.4} parent=0 // pred_fallthru
    _
  // Predicated region
  $region26: #{dense_ngcn_layer.4} parent=0 // pred_check
    _
  $region27: #{dense_ngcn_layer.4} parent=0 // pred_check_branch
    %465 = sbr.rel (0) target = $region29
  $region28: #{dense_ngcn_layer.4} parent=0 // pred_region
    _
  $region29: #{dense_ngcn_layer.4} parent=0 // pred_fallthru
    _

// kernel: dense_ngcn_layer.5
$region0: #{dense_ngcn_layer.5}
  #allocation0 [shape = 'u32[]', space=smem, size = 0x4, offset = 0x4, fixed_abs, tag = 'smem constant byte address 0x4 - core index']
  #allocation1 [shape = 'u32[144,128]{1,0:T(1,128)}', space=vmem, size = 0x12000, scoped, tag = 'internal scratch']
  #allocation2 [shape = 'f32[128,128]{1,0:T(8,128)}', space=vmem, size = 0x10000, scoped, tag = 'scratch operand']
  #allocation3 [shape = 's32[1]{0}', space=sflag, size = 0x4, scoped, tag = 'scoped memory for dense_ngcn_layer.5']
  #allocation4 [shape = 's32[1]{0:T(128)S(6)}', space=smem, size = 0x200, scoped, tag = 'prefetched SMEM operand 0']
  #allocation5 [shape = 's32[1]{0:T(128)S(6)}', space=smem, size = 0x200, scoped, tag = 'prefetched SMEM operand 1']
  %s0 = inlined_call_operand.<no memory space> [shape: s32[1], index: 0, kind: input, shape index: {}]
  %s1 = inlined_call_operand.<no memory space> [shape: s32[1], index: 1, kind: input, shape index: {}]
  %s2 = inlined_call_operand.vmem [shape: bf16[128,128], index: 2, kind: input, shape index: {}]
  %s3 = inlined_call_operand.vmem [shape: bf16[128,128], index: 3, kind: input, shape index: {}]
  %s4 = inlined_call_operand.vmem [shape: f32[1,128], index: 4, kind: input, shape index: {}]
  %s5 = inlined_call_operand.vmem [shape: f32[128,128], index: 5, kind: output, shape index: {}]
  %s6 = sld [smem:[#allocation0]]
  $region34: #{dense_ngcn_layer.5} parent=0
    _
  %s8 = ssub.s32 1, %s6
  %s9 = scalar_select 0, %s8, %s6
  %10 = sst [smem:[#allocation4]] %s0
  %11 = sst [smem:[#allocation5]] %s1
  // Predicated region
  $region2: #{dense_ngcn_layer.5} parent=0 // pred_check
    _
  $region3: #{dense_ngcn_layer.5} parent=0 // pred_check_branch
    %13 = sbr.rel (0) target = $region5
  $region4: #{dense_ngcn_layer.5} parent=0 // pred_region
    %s14 = sadd.s32 0, 0
    %s15 = sld [smem:[#allocation4 + %s14]]
    %p16 = scmp.lt.s32.totalorder %s15, 0
    %s17 = scalar_select %p16, %s15, 0
    %s18 = smul.addr %s17, 4
    %s19 = scalar_lea.vmem %s2, %s18
    %s20 = sadd.s32 0, 0
    %s21 = sld [smem:[#allocation4 + %s20]]
  $region5: #{dense_ngcn_layer.5} parent=0 // pred_fallthru
    _
  // Predicated region
  $region6: #{dense_ngcn_layer.5} parent=0 // pred_check
    _
  $region7: #{dense_ngcn_layer.5} parent=0 // pred_check_branch
    %23 = sbr.rel (0) target = $region9
  $region8: #{dense_ngcn_layer.5} parent=0 // pred_region
    %s24 = sadd.s32 0, 0
    %s25 = sld [smem:[#allocation4 + %s24]]
    %s26 = smul.u32 16, %s25
    %p27 = scmp.lt.s32.totalorder %s26, 15
    %s28 = scalar_select %p27, %s26, 15
    %s29 = smul.addr %s28, 4
    %s30 = scalar_lea.vmem %s3, %s29
    %s31 = sadd.s32 0, 0
    %s32 = sld [smem:[#allocation4 + %s31]]
    %s33 = smul.u32 16, %s32
  $region9: #{dense_ngcn_layer.5} parent=0 // pred_fallthru
    _
  // Predicated region
  $region10: #{dense_ngcn_layer.5} parent=0 // pred_check
    _
  $region11: #{dense_ngcn_layer.5} parent=0 // pred_check_branch
    %35 = sbr.rel (0) target = $region13
  $region12: #{dense_ngcn_layer.5} parent=0 // pred_region
    _
  $region13: #{dense_ngcn_layer.5} parent=0 // pred_fallthru
    _
  %s36 = sadd.s32 0, 0
  %s37 = sld [smem:[#allocation4 + %s36]]
  %p38 = scmp.lt.s32.totalorder %s37, 0
  %s39 = scalar_select %p38, %s37, 0
  %s40 = smul.addr %s39, 4
  %s41 = scalar_lea.vmem %s2, %s40
  %s42 = sadd.s32 0, 0
  %s43 = sld [smem:[#allocation4 + %s42]]
  %s44 = smul.u32 16, %s43
  %p45 = scmp.lt.s32.totalorder %s44, 15
  %s46 = scalar_select %p45, %s44, 15
  %s47 = smul.addr %s46, 4
  %s48 = scalar_lea.vmem %s3, %s47
  %s49 = sadd.s32 0, 0
  %s50 = sld [smem:[#allocation4 + %s49]]
  %p51 = scmp.lt.s32.totalorder %s50, 0
  %s52 = scalar_select %p51, %s50, 0
  %s53 = smul.addr %s52, 4
  %s54 = scalar_lea.vmem %s2, %s53
  %s55 = sadd.s32 0, 0
  %s56 = sld [smem:[#allocation4 + %s55]]
  %s57 = sadd.s32 0, 0
  %s58 = sld [smem:[#allocation4 + %s57]]
  %s59 = smul.u32 16, %s58
  %p60 = scmp.lt.s32.totalorder %s59, 15
  %s61 = scalar_select %p60, %s59, 15
  %s62 = smul.addr %s61, 4
  %s63 = scalar_lea.vmem %s3, %s62
  %s64 = sadd.s32 0, 0
  %s65 = sld [smem:[#allocation4 + %s64]]
  %s66 = smul.u32 16, %s65
  %p68 = scmp.eq.s32.totalorder 0, 0
  // Predicated region
  $region14: #{dense_ngcn_layer.5} parent=0 // pred_check
    %p69 = pneg %p68
  $region15: #{dense_ngcn_layer.5} parent=0 // pred_check_branch
    %71 = sbr.rel (%p69) target = $region17
  $region16: #{dense_ngcn_layer.5} parent=0 // pred_region
    %72 = vst [vmem:[#allocation2] sm:$0xff] 0.0
    %73 = vst [vmem:[#allocation2 + $0x8] sm:$0xff] 0.0
    %74 = vst [vmem:[#allocation2 + $0x10] sm:$0xff] 0.0
    %75 = vst [vmem:[#allocation2 + $0x18] sm:$0xff] 0.0
    %76 = vst [vmem:[#allocation2 + $0x20] sm:$0xff] 0.0
    %77 = vst [vmem:[#allocation2 + $0x28] sm:$0xff] 0.0
    %78 = vst [vmem:[#allocation2 + $0x30] sm:$0xff] 0.0
    %79 = vst [vmem:[#allocation2 + $0x38] sm:$0xff] 0.0
    %80 = vst [vmem:[#allocation2 + $0x40] sm:$0xff] 0.0
    %81 = vst [vmem:[#allocation2 + $0x48] sm:$0xff] 0.0
    %82 = vst [vmem:[#allocation2 + $0x50] sm:$0xff] 0.0
    %83 = vst [vmem:[#allocation2 + $0x58] sm:$0xff] 0.0
    %84 = vst [vmem:[#allocation2 + $0x60] sm:$0xff] 0.0
    %85 = vst [vmem:[#allocation2 + $0x68] sm:$0xff] 0.0
    %86 = vst [vmem:[#allocation2 + $0x70] sm:$0xff] 0.0
    %87 = vst [vmem:[#allocation2 + $0x78] sm:$0xff] 0.0
  $region17: #{dense_ngcn_layer.5} parent=0 // pred_fallthru
    _
  %s88 = sld [smem:[#allocation5]]
  %p89 = scmp.lt.s32.totalorder 0, %s88
  // Predicated region
  $region18: #{dense_ngcn_layer.5} parent=0 // pred_check
    %p90 = pneg %p89
  $region19: #{dense_ngcn_layer.5} parent=0 // pred_check_branch
    %92 = sbr.rel (%p90) target = $region21
  $region20: #{dense_ngcn_layer.5} parent=0 // pred_region
    %v93 = vld [vmem:[#allocation2] sm:$0xff]
    %v94 = vld [vmem:[#allocation2 + $0x8] sm:$0xff]
    %v95 = vld [vmem:[#allocation2 + $0x10] sm:$0xff]
    %v96 = vld [vmem:[#allocation2 + $0x18] sm:$0xff]
    %v97 = vld [vmem:[#allocation2 + $0x20] sm:$0xff]
    %v98 = vld [vmem:[#allocation2 + $0x28] sm:$0xff]
    %v99 = vld [vmem:[#allocation2 + $0x30] sm:$0xff]
    %v100 = vld [vmem:[#allocation2 + $0x38] sm:$0xff]
    %v101 = vld [vmem:[#allocation2 + $0x40] sm:$0xff]
    %v102 = vld [vmem:[#allocation2 + $0x48] sm:$0xff]
    %v103 = vld [vmem:[#allocation2 + $0x50] sm:$0xff]
    %v104 = vld [vmem:[#allocation2 + $0x58] sm:$0xff]
    %v105 = vld [vmem:[#allocation2 + $0x60] sm:$0xff]
    %v106 = vld [vmem:[#allocation2 + $0x68] sm:$0xff]
    %v107 = vld [vmem:[#allocation2 + $0x70] sm:$0xff]
    %v108 = vld [vmem:[#allocation2 + $0x78] sm:$0xff]
    %v109 = vld [vmem:[%s54] sm:$0xf]
    %v110 = vld [vmem:[%s54 + $0x4] sm:$0xf]
    %v111 = vld [vmem:[%s54 + $0x8] sm:$0xf]
    %v112 = vld [vmem:[%s54 + $0xc] sm:$0xf]
    %v113 = vld [vmem:[%s54 + $0x10] sm:$0xf]
    %v114 = vld [vmem:[%s54 + $0x14] sm:$0xf]
    %v115 = vld [vmem:[%s54 + $0x18] sm:$0xf]
    %v116 = vld [vmem:[%s54 + $0x1c] sm:$0xf]
    %v117 = vld [vmem:[%s54 + $0x20] sm:$0xf]
    %v118 = vld [vmem:[%s54 + $0x24] sm:$0xf]
    %v119 = vld [vmem:[%s54 + $0x28] sm:$0xf]
    %v120 = vld [vmem:[%s54 + $0x2c] sm:$0xf]
    %v121 = vld [vmem:[%s54 + $0x30] sm:$0xf]
    %v122 = vld [vmem:[%s54 + $0x34] sm:$0xf]
    %v123 = vld [vmem:[%s54 + $0x38] sm:$0xf]
    %v124 = vld [vmem:[%s54 + $0x3c] sm:$0xf]
    %v125 = vld [vmem:[%s63] sm:$0xf]
    %v126 = vld [vmem:[%s63 + $0x4] sm:$0xf]
    %v127 = vld [vmem:[%s63 + $0x8] sm:$0xf]
    %v128 = vld [vmem:[%s63 + $0xc] sm:$0xf]
    %v129 = vld [vmem:[%s63 + $0x10] sm:$0xf]
    %v130 = vld [vmem:[%s63 + $0x14] sm:$0xf]
    %v131 = vld [vmem:[%s63 + $0x18] sm:$0xf]
    %v132 = vld [vmem:[%s63 + $0x1c] sm:$0xf]
    %v133 = vld [vmem:[%s63 + $0x20] sm:$0xf]
    %v134 = vld [vmem:[%s63 + $0x24] sm:$0xf]
    %v135 = vld [vmem:[%s63 + $0x28] sm:$0xf]
    %v136 = vld [vmem:[%s63 + $0x2c] sm:$0xf]
    %v137 = vld [vmem:[%s63 + $0x30] sm:$0xf]
    %v138 = vld [vmem:[%s63 + $0x34] sm:$0xf]
    %v139 = vld [vmem:[%s63 + $0x38] sm:$0xf]
    %v140 = vld [vmem:[%s63 + $0x3c] sm:$0xf]
    %v157 = vunpack.c.l.b16 %v109
    %v158 = vunpack.c.l.b16 %v110
    %v159 = vunpack.c.l.b16 %v111
    %v160 = vunpack.c.l.b16 %v112
    %v161 = vunpack.c.l.b16 %v113
    %v162 = vunpack.c.l.b16 %v114
    %v163 = vunpack.c.l.b16 %v115
    %v164 = vunpack.c.l.b16 %v116
    %v165 = vunpack.c.l.b16 %v117
    %v166 = vunpack.c.l.b16 %v118
    %v167 = vunpack.c.l.b16 %v119
    %v168 = vunpack.c.l.b16 %v120
    %v169 = vunpack.c.l.b16 %v121
    %v170 = vunpack.c.l.b16 %v122
    %v171 = vunpack.c.l.b16 %v123
    %v172 = vunpack.c.l.b16 %v124
    %v173 = vpack.c.b16 %v158, %v157
    %v174 = vpack.c.b16 %v160, %v159
    %v175 = vpack.c.b16 %v162, %v161
    %v176 = vpack.c.b16 %v164, %v163
    %v177 = vpack.c.b16 %v166, %v165
    %v178 = vpack.c.b16 %v168, %v167
    %v179 = vpack.c.b16 %v170, %v169
    %v180 = vpack.c.b16 %v172, %v171
    %v205 = vunpack.c.l.b16 %v125
    %v206 = vunpack.c.l.b16 %v126
    %v207 = vunpack.c.l.b16 %v127
    %v208 = vunpack.c.l.b16 %v128
    %v209 = vunpack.c.l.b16 %v129
    %v210 = vunpack.c.l.b16 %v130
    %v211 = vunpack.c.l.b16 %v131
    %v212 = vunpack.c.l.b16 %v132
    %v213 = vunpack.c.l.b16 %v133
    %v214 = vunpack.c.l.b16 %v134
    %v215 = vunpack.c.l.b16 %v135
    %v216 = vunpack.c.l.b16 %v136
    %v217 = vunpack.c.l.b16 %v137
    %v218 = vunpack.c.l.b16 %v138
    %v219 = vunpack.c.l.b16 %v139
    %v220 = vunpack.c.l.b16 %v140
    %v221 = vpack.c.b16 %v206, %v205
    %v222 = vpack.c.b16 %v208, %v207
    %v223 = vpack.c.b16 %v210, %v209
    %v224 = vpack.c.b16 %v212, %v211
    %v225 = vpack.c.b16 %v214, %v213
    %v226 = vpack.c.b16 %v216, %v215
    %v227 = vpack.c.b16 %v218, %v217
    %v228 = vpack.c.b16 %v220, %v219
    %237 = vmatprep.subr.bf16.mxu0 0
    %238 = vmatpush1.bf16.msra.mxu0 %v221
    %239 = vmatprep.subr.bf16.mxu0 0
    %240 = vmatpush1.bf16.msra.mxu0 %v222
    %241 = vmatprep.subr.bf16.mxu0 0
    %242 = vmatpush1.bf16.msra.mxu0 %v223
    %243 = vmatprep.subr.bf16.mxu0 0
    %244 = vmatpush1.bf16.msra.mxu0 %v224
    %245 = vmatprep.subr.bf16.mxu0 0
    %246 = vmatpush1.bf16.msra.mxu0 %v225
    %247 = vmatprep.subr.bf16.mxu0 0
    %248 = vmatpush1.bf16.msra.mxu0 %v226
    %249 = vmatprep.subr.bf16.mxu0 0
    %250 = vmatpush1.bf16.msra.mxu0 %v227
    %251 = vmatprep.subr.bf16.mxu0 0
    %252 = vmatpush1.bf16.msra.mxu0 %v228
    %253 = vmatprep.subr.bf16.mxu0 0
    %254 = vmatpush1.bf16.msra.mxu0 0
    %255 = vmatprep.subr.bf16.mxu0 0
    %256 = vmatpush1.bf16.msra.mxu0 0
    %257 = vmatprep.subr.bf16.mxu0 0
    %258 = vmatpush1.bf16.msra.mxu0 0
    %259 = vmatprep.subr.bf16.mxu0 0
    %260 = vmatpush1.bf16.msra.mxu0 0
    %261 = vmatprep.subr.bf16.mxu0 0
    %262 = vmatpush1.bf16.msra.mxu0 0
    %263 = vmatprep.subr.bf16.mxu0 0
    %264 = vmatpush1.bf16.msra.mxu0 0
    %265 = vmatprep.subr.bf16.mxu0 0
    %266 = vmatpush1.bf16.msra.mxu0 0
    %267 = vmatprep.subr.bf16.mxu0 0
    %268 = vmatpush1.bf16.msra.mxu0 0
    %269 = vmatprep.mubr.bf16.mxu0 0
    %270 = vmatmul.mubr.bf16.gmra.mrb[0].mxu0 %v173
    %v271 = vpop.f32.mrb[0].mxu0
    %v272 = vadd.f32 0.0, %v271
    %v273 = vpop.f32.mrb[0].mxu0
    %v274 = vpop.f32.mrb[0].mxu0
    %v275 = vadd.f32 0.0, %v274
    %v276 = vpop.f32.mrb[0].mxu0
    %277 = vmatprep.mubr.bf16.mxu0 0
    %278 = vmatmul.mubr.bf16.gmra.mrb[0].mxu0 %v174
    %v279 = vpop.f32.mrb[0].mxu0
    %v280 = vadd.f32 0.0, %v279
    %v281 = vpop.f32.mrb[0].mxu0
    %v282 = vpop.f32.mrb[0].mxu0
    %v283 = vadd.f32 0.0, %v282
    %v284 = vpop.f32.mrb[0].mxu0
    %285 = vmatprep.mubr.bf16.mxu0 0
    %286 = vmatmul.mubr.bf16.gmra.mrb[0].mxu0 %v175
    %v287 = vpop.f32.mrb[0].mxu0
    %v288 = vadd.f32 0.0, %v287
    %v289 = vpop.f32.mrb[0].mxu0
    %v290 = vpop.f32.mrb[0].mxu0
    %v291 = vadd.f32 0.0, %v290
    %v292 = vpop.f32.mrb[0].mxu0
    %293 = vmatprep.mubr.bf16.mxu0 0
    %294 = vmatmul.mubr.bf16.gmra.mrb[0].mxu0 %v176
    %v295 = vpop.f32.mrb[0].mxu0
    %v296 = vadd.f32 0.0, %v295
    %v297 = vpop.f32.mrb[0].mxu0
    %v298 = vpop.f32.mrb[0].mxu0
    %v299 = vadd.f32 0.0, %v298
    %v300 = vpop.f32.mrb[0].mxu0
    %301 = vmatprep.mubr.bf16.mxu0 0
    %302 = vmatmul.mubr.bf16.gmra.mrb[0].mxu0 %v177
    %v303 = vpop.f32.mrb[0].mxu0
    %v304 = vadd.f32 0.0, %v303
    %v305 = vpop.f32.mrb[0].mxu0
    %v306 = vpop.f32.mrb[0].mxu0
    %v307 = vadd.f32 0.0, %v306
    %v308 = vpop.f32.mrb[0].mxu0
    %309 = vmatprep.mubr.bf16.mxu0 0
    %310 = vmatmul.mubr.bf16.gmra.mrb[0].mxu0 %v178
    %v311 = vpop.f32.mrb[0].mxu0
    %v312 = vadd.f32 0.0, %v311
    %v313 = vpop.f32.mrb[0].mxu0
    %v314 = vpop.f32.mrb[0].mxu0
    %v315 = vadd.f32 0.0, %v314
    %v316 = vpop.f32.mrb[0].mxu0
    %317 = vmatprep.mubr.bf16.mxu0 0
    %318 = vmatmul.mubr.bf16.gmra.mrb[0].mxu0 %v179
    %v319 = vpop.f32.mrb[0].mxu0
    %v320 = vadd.f32 0.0, %v319
    %v321 = vpop.f32.mrb[0].mxu0
    %v322 = vpop.f32.mrb[0].mxu0
    %v323 = vadd.f32 0.0, %v322
    %v324 = vpop.f32.mrb[0].mxu0
    %325 = vmatprep.mubr.bf16.mxu0 0
    %326 = vmatmul.mubr.bf16.gmra.mrb[0].mxu0 %v180
    %v327 = vpop.f32.mrb[0].mxu0
    %v328 = vadd.f32 0.0, %v327
    %v329 = vpop.f32.mrb[0].mxu0
    %v330 = vpop.f32.mrb[0].mxu0
    %v331 = vadd.f32 0.0, %v330
    %v332 = vpop.f32.mrb[0].mxu0
    %333 = vdwg.mxu0
    %v334 = vadd.f32 %v93, %v272
    %v335 = vadd.f32 %v94, %v275
    %v336 = vadd.f32 %v95, %v280
    %v337 = vadd.f32 %v96, %v283
    %v338 = vadd.f32 %v97, %v288
    %v339 = vadd.f32 %v98, %v291
    %v340 = vadd.f32 %v99, %v296
    %v341 = vadd.f32 %v100, %v299
    %v342 = vadd.f32 %v101, %v304
    %v343 = vadd.f32 %v102, %v307
    %v344 = vadd.f32 %v103, %v312
    %v345 = vadd.f32 %v104, %v315
    %v346 = vadd.f32 %v105, %v320
    %v347 = vadd.f32 %v106, %v323
    %v348 = vadd.f32 %v107, %v328
    %v349 = vadd.f32 %v108, %v331
    %350 = vst [vmem:[#allocation2] sm:$0xff] %v334
    %351 = vst [vmem:[#allocation2 + $0x8] sm:$0xff] %v335
    %352 = vst [vmem:[#allocation2 + $0x10] sm:$0xff] %v336
    %353 = vst [vmem:[#allocation2 + $0x18] sm:$0xff] %v337
    %354 = vst [vmem:[#allocation2 + $0x20] sm:$0xff] %v338
    %355 = vst [vmem:[#allocation2 + $0x28] sm:$0xff] %v339
    %356 = vst [vmem:[#allocation2 + $0x30] sm:$0xff] %v340
    %357 = vst [vmem:[#allocation2 + $0x38] sm:$0xff] %v341
    %358 = vst [vmem:[#allocation2 + $0x40] sm:$0xff] %v342
    %359 = vst [vmem:[#allocation2 + $0x48] sm:$0xff] %v343
    %360 = vst [vmem:[#allocation2 + $0x50] sm:$0xff] %v344
    %361 = vst [vmem:[#allocation2 + $0x58] sm:$0xff] %v345
    %362 = vst [vmem:[#allocation2 + $0x60] sm:$0xff] %v346
    %363 = vst [vmem:[#allocation2 + $0x68] sm:$0xff] %v347
    %364 = vst [vmem:[#allocation2 + $0x70] sm:$0xff] %v348
    %365 = vst [vmem:[#allocation2 + $0x78] sm:$0xff] %v349
  $region21: #{dense_ngcn_layer.5} parent=0 // pred_fallthru
    _
  // Predicated region
  $region22: #{dense_ngcn_layer.5} parent=0 // pred_check
    %p366 = pneg %p68
  $region23: #{dense_ngcn_layer.5} parent=0 // pred_check_branch
    %368 = sbr.rel (%p366) target = $region25
  $region24: #{dense_ngcn_layer.5} parent=0 // pred_region
    %v369 = vld [vmem:[#allocation2] sm:$0xff]
    %v370 = vld [vmem:[#allocation2 + $0x8] sm:$0xff]
    %v371 = vld [vmem:[#allocation2 + $0x10] sm:$0xff]
    %v372 = vld [vmem:[#allocation2 + $0x18] sm:$0xff]
    %v373 = vld [vmem:[#allocation2 + $0x20] sm:$0xff]
    %v374 = vld [vmem:[#allocation2 + $0x28] sm:$0xff]
    %v375 = vld [vmem:[#allocation2 + $0x30] sm:$0xff]
    %v376 = vld [vmem:[#allocation2 + $0x38] sm:$0xff]
    %v377 = vld [vmem:[#allocation2 + $0x40] sm:$0xff]
    %v378 = vld [vmem:[#allocation2 + $0x48] sm:$0xff]
    %v379 = vld [vmem:[#allocation2 + $0x50] sm:$0xff]
    %v380 = vld [vmem:[#allocation2 + $0x58] sm:$0xff]
    %v381 = vld [vmem:[#allocation2 + $0x60] sm:$0xff]
    %v382 = vld [vmem:[#allocation2 + $0x68] sm:$0xff]
    %v383 = vld [vmem:[#allocation2 + $0x70] sm:$0xff]
    %v384 = vld [vmem:[#allocation2 + $0x78] sm:$0xff]
    %v385 = vld [vmem:[%s4] sm:$0x1]
    %v387 = vlaneseq
    %v388 = vshrl.u32 %v387, 7
    %v389 = vsub.s32 0, %v388
    %v390 = vrot.slane %v385, %v389
    %v392 = vadd.f32 %v369, %v390
    %v393 = vadd.f32 %v370, %v390
    %v394 = vadd.f32 %v371, %v390
    %v395 = vadd.f32 %v372, %v390
    %v396 = vadd.f32 %v373, %v390
    %v397 = vadd.f32 %v374, %v390
    %v398 = vadd.f32 %v375, %v390
    %v399 = vadd.f32 %v376, %v390
    %v400 = vadd.f32 %v377, %v390
    %v401 = vadd.f32 %v378, %v390
    %v402 = vadd.f32 %v379, %v390
    %v403 = vadd.f32 %v380, %v390
    %v404 = vadd.f32 %v381, %v390
    %v405 = vadd.f32 %v382, %v390
    %v406 = vadd.f32 %v383, %v390
    %v407 = vadd.f32 %v384, %v390
    %408 = vst [vmem:[%s5] sm:$0xff] %v392
    %409 = vst [vmem:[%s5 + $0x8] sm:$0xff] %v393
    %410 = vst [vmem:[%s5 + $0x10] sm:$0xff] %v394
    %411 = vst [vmem:[%s5 + $0x18] sm:$0xff] %v395
    %412 = vst [vmem:[%s5 + $0x20] sm:$0xff] %v396
    %413 = vst [vmem:[%s5 + $0x28] sm:$0xff] %v397
    %414 = vst [vmem:[%s5 + $0x30] sm:$0xff] %v398
    %415 = vst [vmem:[%s5 + $0x38] sm:$0xff] %v399
    %416 = vst [vmem:[%s5 + $0x40] sm:$0xff] %v400
    %417 = vst [vmem:[%s5 + $0x48] sm:$0xff] %v401
    %418 = vst [vmem:[%s5 + $0x50] sm:$0xff] %v402
    %419 = vst [vmem:[%s5 + $0x58] sm:$0xff] %v403
    %420 = vst [vmem:[%s5 + $0x60] sm:$0xff] %v404
    %421 = vst [vmem:[%s5 + $0x68] sm:$0xff] %v405
    %422 = vst [vmem:[%s5 + $0x70] sm:$0xff] %v406
    %423 = vst [vmem:[%s5 + $0x78] sm:$0xff] %v407
  $region25: #{dense_ngcn_layer.5} parent=0 // pred_fallthru
    _
  // Predicated region
  $region26: #{dense_ngcn_layer.5} parent=0 // pred_check
    _
  $region27: #{dense_ngcn_layer.5} parent=0 // pred_check_branch
    %425 = sbr.rel (0) target = $region29
  $region28: #{dense_ngcn_layer.5} parent=0 // pred_region
    _
  $region29: #{dense_ngcn_layer.5} parent=0 // pred_fallthru
    _
  // Predicated region
  $region30: #{dense_ngcn_layer.5} parent=0 // pred_check
    _
  $region31: #{dense_ngcn_layer.5} parent=0 // pred_check_branch
    %427 = sbr.rel (0) target = $region33
  $region32: #{dense_ngcn_layer.5} parent=0 // pred_region
    _
  $region33: #{dense_ngcn_layer.5} parent=0 // pred_fallthru
    _

</llo_original>
